<compile_context>
chip_gen: v5e
topology: v5e:2x2
jax: 0.10.0
libtpu: 0.0.40
codegen_flags: <defaults>
</compile_context>

<pallas_src>
import jax
import jax.numpy as jnp
from jax.experimental import pallas as pl
from jax.experimental.pallas import tpu as pltpu

H1 = 400         # hidden_1 (true size, as in the PyTorch module)
H2 = 300         # hidden_2 (true size)
H1P = 512        # hidden_1 padded to 4*128 lanes
H2P = 384        # hidden_2 padded to 3*128 lanes
MIN_TB = 16      # bf16 LHS packs 16 sublanes per vreg


def _round_up(n, m):
    return ((n + m - 1) // m) * m


def _critic_kernel(s_ref, a_ref,
                   w1s_ref, w1a_ref, b1_ref,
                   w2_ref, b2_ref, w3_ref, b3_ref,
                   q_ref):
    # bf16 at the MXU inputs, f32 accumulation / epilogue everywhere.
    s = s_ref[...].astype(jnp.bfloat16)            # (TB, state_dim)
    a = a_ref[...].astype(jnp.bfloat16)            # (TB, action_dim)

    # ---- Fused layer-1 for both critics: (TB, 2*H1P) ------------------------
    h = (jnp.dot(s, w1s_ref[...], preferred_element_type=jnp.float32)
         + jnp.dot(a, w1a_ref[...], preferred_element_type=jnp.float32)
         + b1_ref[...])
    h = jnp.maximum(h, 0.0).astype(jnp.bfloat16)   # ReLU, bf16 for next MXU pass
    h1 = h[:, :H1P]                                # critic-1 activations
    h2 = h[:, H1P:]                                # critic-2 activations

    # ---- Critic 1: layer-2 + head (N=1 head as VPU mul + lane reduce) -------
    g1 = jnp.dot(h1, w2_ref[0], preferred_element_type=jnp.float32) + b2_ref[0:1, :]
    g1 = jnp.maximum(g1, 0.0)                      # (TB, H2P) f32
    q1 = jnp.sum(g1 * w3_ref[0:1, :], axis=-1, keepdims=True)

    # ---- Critic 2 ------------------------------------------------------------
    g2 = jnp.dot(h2, w2_ref[1], preferred_element_type=jnp.float32) + b2_ref[1:2, :]
    g2 = jnp.maximum(g2, 0.0)
    q2 = jnp.sum(g2 * w3_ref[1:2, :], axis=-1, keepdims=True)

    # Single (TB, 2) store: column 0 = Q1, column 1 = Q2 (head biases added here).
    q_ref[...] = jnp.concatenate([q1, q2], axis=-1) + b3_ref[...]


_WEIGHT_ORDER = ("w1s", "w1a", "b1", "w2", "b2", "w3", "b3")


def _resident_spec(w):
    # Weights stay VMEM-resident across the whole batch grid (constant index_map).
    n = w.ndim
    return pl.BlockSpec(w.shape, lambda i, n=n: (0,) * n)


def critic_forward(state, action, params, *, block_b=512):
    """state: (B, state_dim), action: (B, action_dim) -> (Q1, Q2), each (B, 1)."""
    B, state_dim = state.shape
    action_dim = action.shape[1]

    state = state.astype(jnp.float32)
    action = action.astype(jnp.float32)

    # Batch tiling: pad to a multiple of 16 rows; prefer >= 2 grid steps when
    # the batch is big enough so v7x's two TensorCores both get work.
    bp = max(MIN_TB, _round_up(B, MIN_TB))
    if bp > block_b:
        tb = block_b
        bp = _round_up(bp, tb)
    elif bp >= 16 * MIN_TB:                 # >= 256 rows: split into 2 tiles
        tb = _round_up(pl.cdiv(bp, 2), MIN_TB)
        bp = 2 * tb
    else:
        tb = bp
    if bp != B:
        pad = bp - B
        state = jnp.pad(state, ((0, pad), (0, 0)))
        action = jnp.pad(action, ((0, pad), (0, 0)))

    grid = (bp // tb,)
    batch_map = lambda i: (i, 0)            # tiles move along the batch axis

    weight_args = [params[k] for k in _WEIGHT_ORDER]
    weight_specs = [_resident_spec(w) for w in weight_args]

    in_specs = ([pl.BlockSpec((tb, state_dim), batch_map),
                 pl.BlockSpec((tb, action_dim), batch_map)]
                + weight_specs)
    out_spec = pl.BlockSpec((tb, 2), batch_map)

    in_dim = state_dim + action_dim
    flops = 2 * bp * (in_dim * 2 * H1P + 2 * H1P * H2P + 2 * H2P)
    bytes_accessed = (sum(int(w.size) * w.dtype.itemsize for w in weight_args)
                      + bp * in_dim * 4 + bp * 2 * 4)
    cost = pl.CostEstimate(flops=flops, transcendentals=0,
                           bytes_accessed=bytes_accessed)

    q = pl.pallas_call(
        _critic_kernel,
        out_shape=jax.ShapeDtypeStruct((bp, 2), jnp.float32),
        grid=grid,
        in_specs=in_specs,
        out_specs=out_spec,
        compiler_params=pltpu.CompilerParams(
            dimension_semantics=("parallel",)),
        cost_estimate=cost,
    )(state, action, *weight_args)

    q = q[:B]
    return q[:, 0:1], q[:, 1:2]


def init_raw_params(state_dim, action_dim, key):
    """PyTorch-style init: U(-1/sqrt(fan_in), 1/sqrt(fan_in)); weights stored
    as (in_features, out_features), biases as (1, out_features)."""
    dims = [("w1", "b1", state_dim + action_dim, H1),
            ("w2", "b2", H1, H2),
            ("w3", "b3", H2, 1),
            ("w4", "b4", state_dim + action_dim, H1),
            ("w5", "b5", H1, H2),
            ("w6", "b6", H2, 1)]
    params = {}
    for wname, bname, fan_in, fan_out in dims:
        key, kw, kb = jax.random.split(key, 3)
        bound = 1.0 / (fan_in ** 0.5)
        params[wname] = jax.random.uniform(kw, (fan_in, fan_out), jnp.float32,
                                           minval=-bound, maxval=bound)
        params[bname] = jax.random.uniform(kb, (1, fan_out), jnp.float32,
                                           minval=-bound, maxval=bound)
    return params


def pack_params(raw, state_dim, action_dim):
    """Convert reference-layout f32 params into the kernel layout:
    bf16 matmul weights, lane-padded hidden dims (400->512, 300->384),
    layer-1 of both critics fused along the output dim and split into
    state / action row blocks, layer-2 / head params stacked on a (2,...) axis,
    f32 biases and f32 head weights."""
    def pad_cols(w, target):
        return jnp.pad(w, ((0, 0), (0, target - w.shape[1])))

    p = {}
    # Layer 1 / 4: pad output cols to H1P, fuse both critics along the output
    # dim, split the concat-input rows into state and action halves.
    w1p = pad_cols(raw["w1"], H1P)                       # (in_dim, H1P)
    w4p = pad_cols(raw["w4"], H1P)
    p["w1s"] = jnp.concatenate([w1p[:state_dim], w4p[:state_dim]],
                               axis=1).astype(jnp.bfloat16)   # (state_dim, 2*H1P)
    p["w1a"] = jnp.concatenate([w1p[state_dim:], w4p[state_dim:]],
                               axis=1).astype(jnp.bfloat16)   # (action_dim, 2*H1P)
    p["b1"] = jnp.concatenate([pad_cols(raw["b1"], H1P),
                               pad_cols(raw["b4"], H1P)], axis=1)  # (1, 2*H1P) f32
    # Layer 2 / 5: pad K rows to H1P, output cols to H2P, stack the two critics.
    pad25 = ((0, H1P - H1), (0, H2P - H2))
    p["w2"] = jnp.stack([jnp.pad(raw["w2"], pad25),
                         jnp.pad(raw["w5"], pad25)], axis=0).astype(jnp.bfloat16)
    p["b2"] = jnp.concatenate([pad_cols(raw["b2"], H2P),
                               pad_cols(raw["b5"], H2P)], axis=0)  # (2, H2P) f32
    # Heads: f32 (2, H2P) rows for the VPU multiply + lane reduce; biases (1, 2).
    p["w3"] = jnp.concatenate([pad_cols(raw["w3"].T, H2P),
                               pad_cols(raw["w6"].T, H2P)], axis=0)
    p["b3"] = jnp.concatenate([raw["b3"], raw["b6"]], axis=1)      # (1, 2) f32
    return p


def _reference_forward(state, action, raw):
    """Pure-JAX f32 reference of the original PyTorch forward."""
    x = jnp.concatenate([state, action], axis=1)
    h = jax.nn.relu(x @ raw["w1"] + raw["b1"])
    h = jax.nn.relu(h @ raw["w2"] + raw["b2"])
    q1 = h @ raw["w3"] + raw["b3"]
    h = jax.nn.relu(x @ raw["w4"] + raw["b4"])
    h = jax.nn.relu(h @ raw["w5"] + raw["b5"])
    q2 = h @ raw["w6"] + raw["b6"]
    return q1, q2


if __name__ == "__main__":
    key = jax.random.PRNGKey(0)
    k_params, k_state, k_action = jax.random.split(key, 3)

    batch, state_dim, action_dim = 4, 16, 8

    raw = init_raw_params(state_dim, action_dim, k_params)
    params = pack_params(raw, state_dim, action_dim)
    state = jax.random.normal(k_state, (batch, state_dim), jnp.float32)
    action = jax.random.normal(k_action, (batch, action_dim), jnp.float32)

    q1, q2 = critic_forward(state, action, params)
    jax.block_until_ready((q1, q2))

    # Check against the exact f32 reference (bf16 weights/activations -> relaxed tol).
    r1, r2 = _reference_forward(state, action, raw)
    assert q1.shape == (batch, 1) and q2.shape == (batch, 1)
    assert jnp.allclose(q1, r1, atol=5e-2, rtol=5e-2)
    assert jnp.allclose(q2, r2, atol=5e-2, rtol=5e-2)

    print("KERNEL_OK")
</pallas_src>

<mosaic_0001>
module attributes {stable_mosaic.version = 11 : i64} {
  func.func @_critic_kernel(%arg0: i32, %arg1: memref<16x16xf32, #tpu.memory_space<vmem>>, %arg2: memref<16x8xf32, #tpu.memory_space<vmem>>, %arg3: memref<16x1024xbf16, #tpu.memory_space<vmem>>, %arg4: memref<8x1024xbf16, #tpu.memory_space<vmem>>, %arg5: memref<1x1024xf32, #tpu.memory_space<vmem>>, %arg6: memref<2x512x384xbf16, #tpu.memory_space<vmem>>, %arg7: memref<2x384xf32, #tpu.memory_space<vmem>>, %arg8: memref<2x384xf32, #tpu.memory_space<vmem>>, %arg9: memref<1x2xf32, #tpu.memory_space<vmem>>, %arg10: memref<16x2xf32, #tpu.memory_space<vmem>>) attributes {dimension_semantics = [#tpu.dimension_semantics<parallel>], iteration_bounds = array<i64: 1>, scalar_prefetch = 0 : i64, scratch_operands = 0 : i64, tpu.core_type = #tpu.core_type<tc>, window_params = [{transform_indices = @transform_0, window_bounds = array<i64: 16, 16>}, {transform_indices = @transform_1, window_bounds = array<i64: 16, 8>}, {pipeline_mode = #tpu.pipeline_mode<synchronous>, transform_indices = @transform_2, window_bounds = array<i64: 16, 1024>}, {pipeline_mode = #tpu.pipeline_mode<synchronous>, transform_indices = @transform_3, window_bounds = array<i64: 8, 1024>}, {pipeline_mode = #tpu.pipeline_mode<synchronous>, transform_indices = @transform_4, window_bounds = array<i64: 1, 1024>}, {pipeline_mode = #tpu.pipeline_mode<synchronous>, transform_indices = @transform_5, window_bounds = array<i64: 2, 512, 384>}, {pipeline_mode = #tpu.pipeline_mode<synchronous>, transform_indices = @transform_6, window_bounds = array<i64: 2, 384>}, {pipeline_mode = #tpu.pipeline_mode<synchronous>, transform_indices = @transform_7, window_bounds = array<i64: 2, 384>}, {pipeline_mode = #tpu.pipeline_mode<synchronous>, transform_indices = @transform_8, window_bounds = array<i64: 1, 2>}, {transform_indices = @transform_9, window_bounds = array<i64: 16, 2>}]} {
    %c0 = arith.constant 0 : index
    %c0_0 = arith.constant 0 : index
    %0 = vector.load %arg1[%c0, %c0_0] : memref<16x16xf32, #tpu.memory_space<vmem>>, vector<16x16xf32>
    %1 = arith.truncf %0 : vector<16x16xf32> to vector<16x16xbf16>
    %c0_1 = arith.constant 0 : index
    %c0_2 = arith.constant 0 : index
    %2 = vector.load %arg2[%c0_1, %c0_2] : memref<16x8xf32, #tpu.memory_space<vmem>>, vector<16x8xf32>
    %3 = arith.truncf %2 : vector<16x8xf32> to vector<16x8xbf16>
    %c0_3 = arith.constant 0 : index
    %c0_4 = arith.constant 0 : index
    %4 = vector.load %arg3[%c0_3, %c0_4] : memref<16x1024xbf16, #tpu.memory_space<vmem>>, vector<16x1024xbf16>
    %cst = arith.constant dense<0.000000e+00> : vector<16x1024xf32>
    %5 = tpu.matmul %1, %4, %cst {dimension_numbers = #tpu.dot_dimension_numbers<[1], [0], [0], [1], [0, 0, 1, 1], [], []>} : vector<16x16xbf16>, vector<16x1024xbf16>, vector<16x1024xf32> -> vector<16x1024xf32>
    %c0_5 = arith.constant 0 : index
    %c0_6 = arith.constant 0 : index
    %6 = vector.load %arg4[%c0_5, %c0_6] : memref<8x1024xbf16, #tpu.memory_space<vmem>>, vector<8x1024xbf16>
    %cst_7 = arith.constant dense<0.000000e+00> : vector<16x1024xf32>
    %7 = tpu.matmul %3, %6, %cst_7 {dimension_numbers = #tpu.dot_dimension_numbers<[1], [0], [0], [1], [0, 0, 1, 1], [], []>} : vector<16x8xbf16>, vector<8x1024xbf16>, vector<16x1024xf32> -> vector<16x1024xf32>
    %8 = arith.addf %5, %7 : vector<16x1024xf32>
    %c0_8 = arith.constant 0 : index
    %c0_9 = arith.constant 0 : index
    %9 = vector.load %arg5[%c0_8, %c0_9] : memref<1x1024xf32, #tpu.memory_space<vmem>>, vector<1x1024xf32>
    %10 = vector.broadcast %9 : vector<1x1024xf32> to vector<16x1024xf32>
    %11 = arith.addf %8, %10 : vector<16x1024xf32>
    %cst_10 = arith.constant 0.000000e+00 : f32
    %12 = vector.broadcast %cst_10 : f32 to vector<16x1024xf32>
    %13 = arith.maximumf %11, %12 : vector<16x1024xf32>
    %14 = arith.truncf %13 : vector<16x1024xf32> to vector<16x1024xbf16>
    %15 = vector.extract_strided_slice %14 {offsets = [0, 0], sizes = [16, 512], strides = [1, 1]} : vector<16x1024xbf16> to vector<16x512xbf16>
    %16 = vector.extract_strided_slice %14 {offsets = [0, 512], sizes = [16, 512], strides = [1, 1]} : vector<16x1024xbf16> to vector<16x512xbf16>
    %c0_11 = arith.constant 0 : index
    %c0_12 = arith.constant 0 : index
    %c0_13 = arith.constant 0 : index
    %17 = vector.load %arg6[%c0_11, %c0_12, %c0_13] : memref<2x512x384xbf16, #tpu.memory_space<vmem>>, vector<1x512x384xbf16>
    %18 = vector.shape_cast %17 : vector<1x512x384xbf16> to vector<512x384xbf16>
    %cst_14 = arith.constant dense<0.000000e+00> : vector<16x384xf32>
    %19 = tpu.matmul %15, %18, %cst_14 {dimension_numbers = #tpu.dot_dimension_numbers<[1], [0], [0], [1], [0, 0, 1, 1], [], []>} : vector<16x512xbf16>, vector<512x384xbf16>, vector<16x384xf32> -> vector<16x384xf32>
    %c0_15 = arith.constant 0 : index
    %c0_16 = arith.constant 0 : index
    %20 = vector.load %arg7[%c0_15, %c0_16] : memref<2x384xf32, #tpu.memory_space<vmem>>, vector<1x384xf32>
    %21 = vector.broadcast %20 : vector<1x384xf32> to vector<16x384xf32>
    %22 = arith.addf %19, %21 : vector<16x384xf32>
    %cst_17 = arith.constant 0.000000e+00 : f32
    %23 = vector.broadcast %cst_17 : f32 to vector<16x384xf32>
    %24 = arith.maximumf %22, %23 : vector<16x384xf32>
    %c0_18 = arith.constant 0 : index
    %c0_19 = arith.constant 0 : index
    %25 = vector.load %arg8[%c0_18, %c0_19] : memref<2x384xf32, #tpu.memory_space<vmem>>, vector<1x384xf32>
    %26 = vector.broadcast %25 : vector<1x384xf32> to vector<16x384xf32>
    %27 = arith.mulf %24, %26 : vector<16x384xf32>
    %cst_20 = arith.constant dense<0.000000e+00> : vector<16xf32>
    %28 = vector.multi_reduction <add>, %27, %cst_20 [1] : vector<16x384xf32> to vector<16xf32>
    %29 = vector.shape_cast %28 : vector<16xf32> to vector<16x1xf32>
    %c1 = arith.constant 1 : index
    %c0_21 = arith.constant 0 : index
    %c0_22 = arith.constant 0 : index
    %30 = vector.load %arg6[%c1, %c0_21, %c0_22] : memref<2x512x384xbf16, #tpu.memory_space<vmem>>, vector<1x512x384xbf16>
    %31 = vector.shape_cast %30 : vector<1x512x384xbf16> to vector<512x384xbf16>
    %cst_23 = arith.constant dense<0.000000e+00> : vector<16x384xf32>
    %32 = tpu.matmul %16, %31, %cst_23 {dimension_numbers = #tpu.dot_dimension_numbers<[1], [0], [0], [1], [0, 0, 1, 1], [], []>} : vector<16x512xbf16>, vector<512x384xbf16>, vector<16x384xf32> -> vector<16x384xf32>
    %c1_24 = arith.constant 1 : index
    %c0_25 = arith.constant 0 : index
    %33 = vector.load %arg7[%c1_24, %c0_25] : memref<2x384xf32, #tpu.memory_space<vmem>>, vector<1x384xf32>
    %34 = vector.broadcast %33 : vector<1x384xf32> to vector<16x384xf32>
    %35 = arith.addf %32, %34 : vector<16x384xf32>
    %cst_26 = arith.constant 0.000000e+00 : f32
    %36 = vector.broadcast %cst_26 : f32 to vector<16x384xf32>
    %37 = arith.maximumf %35, %36 : vector<16x384xf32>
    %c1_27 = arith.constant 1 : index
    %c0_28 = arith.constant 0 : index
    %38 = vector.load %arg8[%c1_27, %c0_28] : memref<2x384xf32, #tpu.memory_space<vmem>>, vector<1x384xf32>
    %39 = vector.broadcast %38 : vector<1x384xf32> to vector<16x384xf32>
    %40 = arith.mulf %37, %39 : vector<16x384xf32>
    %cst_29 = arith.constant dense<0.000000e+00> : vector<16xf32>
    %41 = vector.multi_reduction <add>, %40, %cst_29 [1] : vector<16x384xf32> to vector<16xf32>
    %42 = vector.shape_cast %41 : vector<16xf32> to vector<16x1xf32>
    %43 = tpu.concatenate %29, %42 in 1 : vector<16x1xf32>, vector<16x1xf32> -> vector<16x2xf32>
    %c0_30 = arith.constant 0 : index
    %c0_31 = arith.constant 0 : index
    %44 = vector.load %arg9[%c0_30, %c0_31] : memref<1x2xf32, #tpu.memory_space<vmem>>, vector<1x2xf32>
    %45 = vector.broadcast %44 : vector<1x2xf32> to vector<16x2xf32>
    %46 = arith.addf %43, %45 : vector<16x2xf32>
    %c0_32 = arith.constant 0 : index
    %c0_33 = arith.constant 0 : index
    %47 = vector.load %arg10[%c0_32, %c0_33] : memref<16x2xf32, #tpu.memory_space<vmem>>, vector<16x2xf32>
    tpu.vector_store %arg10[%c0_32, %c0_33], %46 {strides = array<i32>} : memref<16x2xf32, #tpu.memory_space<vmem>>, vector<16x2xf32>,
    return
  }
  func.func @transform_0(%arg0: i32) -> (i32, i32) {
    %c0_i32 = arith.constant 0 : i32
    %c0_i32_0 = arith.constant 0 : i32
    return %arg0, %c0_i32 : i32, i32
  }
  func.func @transform_1(%arg0: i32) -> (i32, i32) {
    %c0_i32 = arith.constant 0 : i32
    %c0_i32_0 = arith.constant 0 : i32
    return %arg0, %c0_i32 : i32, i32
  }
  func.func @transform_2(%arg0: i32) -> (i32, i32) {
    %c0_i32 = arith.constant 0 : i32
    %c0_i32_0 = arith.constant 0 : i32
    %c0_i32_1 = arith.constant 0 : i32
    return %c0_i32, %c0_i32_0 : i32, i32
  }
  func.func @transform_3(%arg0: i32) -> (i32, i32) {
    %c0_i32 = arith.constant 0 : i32
    %c0_i32_0 = arith.constant 0 : i32
    %c0_i32_1 = arith.constant 0 : i32
    return %c0_i32, %c0_i32_0 : i32, i32
  }
  func.func @transform_4(%arg0: i32) -> (i32, i32) {
    %c0_i32 = arith.constant 0 : i32
    %c0_i32_0 = arith.constant 0 : i32
    %c0_i32_1 = arith.constant 0 : i32
    return %c0_i32, %c0_i32_0 : i32, i32
  }
  func.func @transform_5(%arg0: i32) -> (i32, i32, i32) {
    %c0_i32 = arith.constant 0 : i32
    %c0_i32_0 = arith.constant 0 : i32
    %c0_i32_1 = arith.constant 0 : i32
    %c0_i32_2 = arith.constant 0 : i32
    return %c0_i32, %c0_i32_0, %c0_i32_1 : i32, i32, i32
  }
  func.func @transform_6(%arg0: i32) -> (i32, i32) {
    %c0_i32 = arith.constant 0 : i32
    %c0_i32_0 = arith.constant 0 : i32
    %c0_i32_1 = arith.constant 0 : i32
    return %c0_i32, %c0_i32_0 : i32, i32
  }
  func.func @transform_7(%arg0: i32) -> (i32, i32) {
    %c0_i32 = arith.constant 0 : i32
    %c0_i32_0 = arith.constant 0 : i32
    %c0_i32_1 = arith.constant 0 : i32
    return %c0_i32, %c0_i32_0 : i32, i32
  }
  func.func @transform_8(%arg0: i32) -> (i32, i32) {
    %c0_i32 = arith.constant 0 : i32
    %c0_i32_0 = arith.constant 0 : i32
    %c0_i32_1 = arith.constant 0 : i32
    return %c0_i32, %c0_i32_0 : i32, i32
  }
  func.func @transform_9(%arg0: i32) -> (i32, i32) {
    %c0_i32 = arith.constant 0 : i32
    %c0_i32_0 = arith.constant 0 : i32
    return %arg0, %c0_i32 : i32, i32
  }
}

</mosaic_0001>

<llo_original>
// kernel: tpu_custom_call.1
$region0: #{tpu_custom_call.1}
  #allocation0 [shape = 'u32[]', space=smem, size = 0x4, offset = 0x4, fixed_abs, tag = 'smem constant byte address 0x4 - core index']
  #allocation1 [shape = 'u32[72,128]{1,0:T(1,128)}', space=vmem, size = 0x9000, scoped, tag = 'internal scratch']
  %s0 = inlined_call_operand.vmem [shape: f32[16,16], index: 0, kind: input, shape index: {}]
  %s1 = inlined_call_operand.vmem [shape: f32[16,8], index: 1, kind: input, shape index: {}]
  %s2 = inlined_call_operand.hbm [shape: bf16[16,1024], index: 2, kind: input, shape index: {}]
  %s3 = inlined_call_operand.hbm [shape: bf16[8,1024], index: 3, kind: input, shape index: {}]
  %s4 = inlined_call_operand.vmem [shape: f32[1,1024], index: 4, kind: input, shape index: {}]
  %s5 = inlined_call_operand.hbm [shape: bf16[2,512,384], index: 5, kind: input, shape index: {}]
  %s6 = inlined_call_operand.hbm [shape: f32[2,384], index: 6, kind: input, shape index: {}]
  %s7 = inlined_call_operand.vmem [shape: f32[2,384], index: 7, kind: input, shape index: {}]
  %s8 = inlined_call_operand.vmem [shape: f32[1,2], index: 8, kind: input, shape index: {}]
  %s9 = inlined_call_operand.vmem [shape: f32[16,2], index: 9, kind: output, shape index: {}]
  %s10 = sld [smem:[#allocation0]]
  $region62: #{tpu_custom_call.1} parent=0
    _
  %s12 = ssub.s32 1, %s10
  %s13 = scalar_select 0, %s12, %s10
  $region1: #{tpu_custom_call.1} parent=0
    #allocation2 [shape = 'u8[32768]{0}', space=vmem, size = 0x8000, scoped, tag = 'input window, operand 2, single buffered']
    #allocation3 [shape = 's32[1]{0}', space=sflag, size = 0x4, scoped, tag = 'scoped memory for tpu_custom_call.1']
    #allocation4 [shape = 'u8[16384]{0}', space=vmem, size = 0x4000, scoped, tag = 'input window, operand 3, single buffered']
    #allocation5 [shape = 's32[1]{0}', space=sflag, size = 0x4, scoped, tag = 'scoped memory for tpu_custom_call.1']
    #allocation6 [shape = 'u8[786432]{0}', space=vmem, size = 0xc0000, scoped, tag = 'input window, operand 5, single buffered']
    #allocation7 [shape = 'u8[3072]{0}', space=vmem, size = 0xc00, scoped, tag = 'input window, operand 6, single buffered']
    #allocation8 [shape = 's32[1]{0}', space=sflag, size = 0x4, scoped, tag = 'scoped memory for tpu_custom_call.1']
    %14 = vsyncpa [#allocation3], 0
    %15 = vsyncpa [#allocation5], 0
    %16 = vsyncpa [#allocation8], 0
    // Predicated region
    $region2: #{tpu_custom_call.1} parent=1 // pred_check
      _
    $region3: #{tpu_custom_call.1} parent=1 // pred_check_branch
      %18 = sbr.rel (0) target = $region5
    $region4: #{tpu_custom_call.1} parent=1 // pred_region
      _
    $region5: #{tpu_custom_call.1} parent=1 // pred_fallthru
      _
    // Predicated region
    $region6: #{tpu_custom_call.1} parent=1 // pred_check
      _
    $region7: #{tpu_custom_call.1} parent=1 // pred_check_branch
      %20 = sbr.rel (0) target = $region9
    $region8: #{tpu_custom_call.1} parent=1 // pred_region
      _
    $region9: #{tpu_custom_call.1} parent=1 // pred_fallthru
      _
    // Predicated region
    $region10: #{tpu_custom_call.1} parent=1 // pred_check
      _
    $region11: #{tpu_custom_call.1} parent=1 // pred_check_branch
      %22 = sbr.rel (0) target = $region13
    $region12: #{tpu_custom_call.1} parent=1 // pred_region
      %24 = vsyncadd [#allocation3], 0
      %s25 = sshll.u32 %s2, 4
      %s26 = int_to_ptr.hbm [resolvable:$true] %s25
      %s27 = sshll.u32 [#allocation2], 4
      %s28 = int_to_ptr.vmem [resolvable:$true] %s27
      %33 = dma.hbm_to_vmem [thread:$0]  %s26, 1024, %s28, [#allocation3], 512, 512, 32
    $region13: #{tpu_custom_call.1} parent=1 // pred_fallthru
      _
    // Predicated region
    $region14: #{tpu_custom_call.1} parent=1 // pred_check
      _
    $region15: #{tpu_custom_call.1} parent=1 // pred_check_branch
      %35 = sbr.rel (0) target = $region17
    $region16: #{tpu_custom_call.1} parent=1 // pred_region
      %37 = vsyncadd [#allocation5], 0
      %s39 = sshll.u32 %s3, 4
      %s40 = int_to_ptr.hbm [resolvable:$true] %s39
      %s41 = sshll.u32 [#allocation4], 4
      %s42 = int_to_ptr.vmem [resolvable:$true] %s41
      %44 = dma.hbm_to_vmem [thread:$0]  %s40, 512, %s42, [#allocation5]
    $region17: #{tpu_custom_call.1} parent=1 // pred_fallthru
      _
    // Predicated region
    $region18: #{tpu_custom_call.1} parent=1 // pred_check
      _
    $region19: #{tpu_custom_call.1} parent=1 // pred_check_branch
      %46 = sbr.rel (0) target = $region21
    $region20: #{tpu_custom_call.1} parent=1 // pred_region
      _
    $region21: #{tpu_custom_call.1} parent=1 // pred_fallthru
      _
    // Predicated region
    $region22: #{tpu_custom_call.1} parent=1 // pred_check
      _
    $region23: #{tpu_custom_call.1} parent=1 // pred_check_branch
      %48 = sbr.rel (0) target = $region25
    $region24: #{tpu_custom_call.1} parent=1 // pred_region
      %50 = vsyncadd [#allocation5], 0
      %s51 = sshll.u32 %s5, 4
      %s52 = int_to_ptr.hbm [resolvable:$true] %s51
      %s53 = sshll.u32 [#allocation6], 4
      %s54 = int_to_ptr.vmem [resolvable:$true] %s53
      %59 = dma.hbm_to_vmem [thread:$0]  %s52, 24576, %s54, [#allocation5], 192, 192, 12
    $region25: #{tpu_custom_call.1} parent=1 // pred_fallthru
      _
    // Predicated region
    $region26: #{tpu_custom_call.1} parent=1 // pred_check
      _
    $region27: #{tpu_custom_call.1} parent=1 // pred_check_branch
      %61 = sbr.rel (0) target = $region29
    $region28: #{tpu_custom_call.1} parent=1 // pred_region
      %63 = vsyncadd [#allocation8], 0
      %s65 = sshll.u32 %s6, 4
      %s66 = int_to_ptr.hbm [resolvable:$true] %s65
      %s67 = sshll.u32 [#allocation7], 4
      %s68 = int_to_ptr.vmem [resolvable:$true] %s67
      %70 = dma.hbm_to_vmem [thread:$0]  %s66, 96, %s68, [#allocation8]
    $region29: #{tpu_custom_call.1} parent=1 // pred_fallthru
      _
    // Predicated region
    $region30: #{tpu_custom_call.1} parent=1 // pred_check
      _
    $region31: #{tpu_custom_call.1} parent=1 // pred_check_branch
      %72 = sbr.rel (0) target = $region33
    $region32: #{tpu_custom_call.1} parent=1 // pred_region
      _
    $region33: #{tpu_custom_call.1} parent=1 // pred_fallthru
      _
    // Predicated region
    $region34: #{tpu_custom_call.1} parent=1 // pred_check
      _
    $region35: #{tpu_custom_call.1} parent=1 // pred_check_branch
      %74 = sbr.rel (0) target = $region37
    $region36: #{tpu_custom_call.1} parent=1 // pred_region
      _
    $region37: #{tpu_custom_call.1} parent=1 // pred_fallthru
      _
    // Predicated region
    $region38: #{tpu_custom_call.1} parent=1 // pred_check
      _
    $region39: #{tpu_custom_call.1} parent=1 // pred_check_branch
      %76 = sbr.rel (0) target = $region41
    $region40: #{tpu_custom_call.1} parent=1 // pred_region
      %78 = dma.done [#allocation3], 1024
    $region41: #{tpu_custom_call.1} parent=1 // pred_fallthru
      _
    // Predicated region
    $region42: #{tpu_custom_call.1} parent=1 // pred_check
      _
    $region43: #{tpu_custom_call.1} parent=1 // pred_check_branch
      %80 = sbr.rel (0) target = $region45
    $region44: #{tpu_custom_call.1} parent=1 // pred_region
      %82 = dma.done [#allocation5], 512
    $region45: #{tpu_custom_call.1} parent=1 // pred_fallthru
      _
    // Predicated region
    $region46: #{tpu_custom_call.1} parent=1 // pred_check
      _
    $region47: #{tpu_custom_call.1} parent=1 // pred_check_branch
      %84 = sbr.rel (0) target = $region49
    $region48: #{tpu_custom_call.1} parent=1 // pred_region
      %86 = dma.done [#allocation5], 24576
    $region49: #{tpu_custom_call.1} parent=1 // pred_fallthru
      _
    // Predicated region
    $region50: #{tpu_custom_call.1} parent=1 // pred_check
      _
    $region51: #{tpu_custom_call.1} parent=1 // pred_check_branch
      %88 = sbr.rel (0) target = $region53
    $region52: #{tpu_custom_call.1} parent=1 // pred_region
      %90 = dma.done [#allocation8], 96
    $region53: #{tpu_custom_call.1} parent=1 // pred_fallthru
      _
    %v92 = vld [vmem:[%s0] sm:$0xff]
    %v93 = vld [vmem:[%s0 + $0x8] sm:$0xff]
    %v94 = vpack.c.bf16 %v93, %v92
    %v95 = vld [vmem:[%s1] sm:$0xff]
    %v96 = vld [vmem:[%s1 + $0x8] sm:$0xff]
    %v97 = vpack.c.bf16 %v96, %v95
    %v98 = vld [vmem:[#allocation2] sm:$0xff]
    %v99 = vld [vmem:[#allocation2 + $0x8] sm:$0xff]
    %v100 = vld [vmem:[#allocation2 + $0x10] sm:$0xff]
    %v101 = vld [vmem:[#allocation2 + $0x18] sm:$0xff]
    %v102 = vld [vmem:[#allocation2 + $0x20] sm:$0xff]
    %v103 = vld [vmem:[#allocation2 + $0x28] sm:$0xff]
    %v104 = vld [vmem:[#allocation2 + $0x30] sm:$0xff]
    %v105 = vld [vmem:[#allocation2 + $0x38] sm:$0xff]
    %v106 = vld [vmem:[#allocation4] sm:$0xff]
    %v107 = vld [vmem:[#allocation4 + $0x8] sm:$0xff]
    %v108 = vld [vmem:[#allocation4 + $0x10] sm:$0xff]
    %v109 = vld [vmem:[#allocation4 + $0x18] sm:$0xff]
    %v114 = vunpack.c.l.b16 %v106
    %v115 = vunpack.c.h.b16 %v106
    %v116 = vunpack.c.l.b16 %v107
    %v117 = vunpack.c.h.b16 %v107
    %v118 = vunpack.c.l.b16 %v108
    %v119 = vunpack.c.h.b16 %v108
    %v120 = vunpack.c.l.b16 %v109
    %v121 = vunpack.c.h.b16 %v109
    %v122 = vpack.c.b16 %v114, %v114
    %v123 = vpack.c.b16 %v115, %v115
    %v124 = vpack.c.b16 %v116, %v116
    %v125 = vpack.c.b16 %v117, %v117
    %v126 = vpack.c.b16 %v118, %v118
    %v127 = vpack.c.b16 %v119, %v119
    %v128 = vpack.c.b16 %v120, %v120
    %v129 = vpack.c.b16 %v121, %v121
    %vm130 = vcmask 64512
    %v132 = vsel %vm130, %v97, 0
    %vm134 = vcmask 1043456
    %v136 = vsel %vm134, %v122, 0
    %v139 = vsel %vm134, %v123, 0
    %v142 = vsel %vm134, %v124, 0
    %v145 = vsel %vm134, %v125, 0
    %v148 = vsel %vm134, %v126, 0
    %v151 = vsel %vm134, %v127, 0
    %v154 = vsel %vm134, %v128, 0
    %v157 = vsel %vm134, %v129, 0
    %159 = vmatpush.bf16.msra.mxu0 0
    %160 = vmatpush.bf16.msra.mxu0 0
    %161 = vmatpush.bf16.msra.mxu0 0
    %162 = vmatpush.bf16.msra.mxu0 0
    %163 = vmatpush.bf16.msra.mxu0 0
    %164 = vmatpush.bf16.msra.mxu0 0
    %165 = vmatpush.bf16.msra.mxu0 0
    %166 = vmatpush.bf16.msra.mxu0 %v136
    %167 = vmatmul.bf16.gmra.mxu0 %v132
    %v168 = vpop.f32.mrf.mxu0
    %v169 = vadd.f32 0.0, %v168
    %v170 = vpop.f32.mrf.mxu0
    %v171 = vadd.f32 0.0, %v170
    %172 = vdwg.mxu0
    %173 = vmatpush.bf16.msra.mxu0 0
    %174 = vmatpush.bf16.msra.mxu0 0
    %175 = vmatpush.bf16.msra.mxu0 0
    %176 = vmatpush.bf16.msra.mxu0 0
    %177 = vmatpush.bf16.msra.mxu0 0
    %178 = vmatpush.bf16.msra.mxu0 0
    %179 = vmatpush.bf16.msra.mxu0 0
    %180 = vmatpush.bf16.msra.mxu0 %v139
    %181 = vmatmul.bf16.gmra.mxu0 %v132
    %v182 = vpop.f32.mrf.mxu0
    %v183 = vadd.f32 0.0, %v182
    %v184 = vpop.f32.mrf.mxu0
    %v185 = vadd.f32 0.0, %v184
    %186 = vdwg.mxu0
    %187 = vmatpush.bf16.msra.mxu0 0
    %188 = vmatpush.bf16.msra.mxu0 0
    %189 = vmatpush.bf16.msra.mxu0 0
    %190 = vmatpush.bf16.msra.mxu0 0
    %191 = vmatpush.bf16.msra.mxu0 0
    %192 = vmatpush.bf16.msra.mxu0 0
    %193 = vmatpush.bf16.msra.mxu0 0
    %194 = vmatpush.bf16.msra.mxu0 %v142
    %195 = vmatmul.bf16.gmra.mxu0 %v132
    %v196 = vpop.f32.mrf.mxu0
    %v197 = vadd.f32 0.0, %v196
    %v198 = vpop.f32.mrf.mxu0
    %v199 = vadd.f32 0.0, %v198
    %200 = vdwg.mxu0
    %201 = vmatpush.bf16.msra.mxu0 0
    %202 = vmatpush.bf16.msra.mxu0 0
    %203 = vmatpush.bf16.msra.mxu0 0
    %204 = vmatpush.bf16.msra.mxu0 0
    %205 = vmatpush.bf16.msra.mxu0 0
    %206 = vmatpush.bf16.msra.mxu0 0
    %207 = vmatpush.bf16.msra.mxu0 0
    %208 = vmatpush.bf16.msra.mxu0 %v145
    %209 = vmatmul.bf16.gmra.mxu0 %v132
    %v210 = vpop.f32.mrf.mxu0
    %v211 = vadd.f32 0.0, %v210
    %v212 = vpop.f32.mrf.mxu0
    %v213 = vadd.f32 0.0, %v212
    %214 = vdwg.mxu0
    %215 = vmatpush.bf16.msra.mxu0 0
    %216 = vmatpush.bf16.msra.mxu0 0
    %217 = vmatpush.bf16.msra.mxu0 0
    %218 = vmatpush.bf16.msra.mxu0 0
    %219 = vmatpush.bf16.msra.mxu0 0
    %220 = vmatpush.bf16.msra.mxu0 0
    %221 = vmatpush.bf16.msra.mxu0 0
    %222 = vmatpush.bf16.msra.mxu0 %v148
    %223 = vmatmul.bf16.gmra.mxu0 %v132
    %v224 = vpop.f32.mrf.mxu0
    %v225 = vadd.f32 0.0, %v224
    %v226 = vpop.f32.mrf.mxu0
    %v227 = vadd.f32 0.0, %v226
    %228 = vdwg.mxu0
    %229 = vmatpush.bf16.msra.mxu0 0
    %230 = vmatpush.bf16.msra.mxu0 0
    %231 = vmatpush.bf16.msra.mxu0 0
    %232 = vmatpush.bf16.msra.mxu0 0
    %233 = vmatpush.bf16.msra.mxu0 0
    %234 = vmatpush.bf16.msra.mxu0 0
    %235 = vmatpush.bf16.msra.mxu0 0
    %236 = vmatpush.bf16.msra.mxu0 %v151
    %237 = vmatmul.bf16.gmra.mxu0 %v132
    %v238 = vpop.f32.mrf.mxu0
    %v239 = vadd.f32 0.0, %v238
    %v240 = vpop.f32.mrf.mxu0
    %v241 = vadd.f32 0.0, %v240
    %242 = vdwg.mxu0
    %243 = vmatpush.bf16.msra.mxu0 0
    %244 = vmatpush.bf16.msra.mxu0 0
    %245 = vmatpush.bf16.msra.mxu0 0
    %246 = vmatpush.bf16.msra.mxu0 0
    %247 = vmatpush.bf16.msra.mxu0 0
    %248 = vmatpush.bf16.msra.mxu0 0
    %249 = vmatpush.bf16.msra.mxu0 0
    %250 = vmatpush.bf16.msra.mxu0 %v154
    %251 = vmatmul.bf16.gmra.mxu0 %v132
    %v252 = vpop.f32.mrf.mxu0
    %v253 = vadd.f32 0.0, %v252
    %v254 = vpop.f32.mrf.mxu0
    %v255 = vadd.f32 0.0, %v254
    %256 = vdwg.mxu0
    %257 = vmatpush.bf16.msra.mxu0 0
    %258 = vmatpush.bf16.msra.mxu0 0
    %259 = vmatpush.bf16.msra.mxu0 0
    %260 = vmatpush.bf16.msra.mxu0 0
    %261 = vmatpush.bf16.msra.mxu0 0
    %262 = vmatpush.bf16.msra.mxu0 0
    %263 = vmatpush.bf16.msra.mxu0 0
    %264 = vmatpush.bf16.msra.mxu0 %v157
    %265 = vmatmul.bf16.gmra.mxu0 %v132
    %v266 = vpop.f32.mrf.mxu0
    %v267 = vadd.f32 0.0, %v266
    %v268 = vpop.f32.mrf.mxu0
    %v269 = vadd.f32 0.0, %v268
    %270 = vdwg.mxu0
    %v279 = vunpack.c.l.b16 %v98
    %v280 = vunpack.c.h.b16 %v98
    %v281 = vunpack.c.l.b16 %v99
    %v282 = vunpack.c.h.b16 %v99
    %v283 = vunpack.c.l.b16 %v100
    %v284 = vunpack.c.h.b16 %v100
    %v285 = vunpack.c.l.b16 %v101
    %v286 = vunpack.c.h.b16 %v101
    %v287 = vunpack.c.l.b16 %v102
    %v288 = vunpack.c.h.b16 %v102
    %v289 = vunpack.c.l.b16 %v103
    %v290 = vunpack.c.h.b16 %v103
    %v291 = vunpack.c.l.b16 %v104
    %v292 = vunpack.c.h.b16 %v104
    %v293 = vunpack.c.l.b16 %v105
    %v294 = vunpack.c.h.b16 %v105
    %v295 = vpack.c.b16 %v287, %v279
    %v296 = vpack.c.b16 %v288, %v280
    %v297 = vpack.c.b16 %v289, %v281
    %v298 = vpack.c.b16 %v290, %v282
    %v299 = vpack.c.b16 %v291, %v283
    %v300 = vpack.c.b16 %v292, %v284
    %v301 = vpack.c.b16 %v293, %v285
    %v302 = vpack.c.b16 %v294, %v286
    %vm311 = vcmask 130048
    %v313 = vsel %vm311, %v94, 0
    %315 = vmatpush.bf16.msra.mxu0 0
    %316 = vmatpush.bf16.msra.mxu0 0
    %317 = vmatpush.bf16.msra.mxu0 0
    %318 = vmatpush.bf16.msra.mxu0 0
    %319 = vmatpush.bf16.msra.mxu0 0
    %320 = vmatpush.bf16.msra.mxu0 0
    %321 = vmatpush.bf16.msra.mxu0 0
    %322 = vmatpush.bf16.msra.mxu0 %v295
    %323 = vmatmul.bf16.gmra.mxu0 %v313
    %v324 = vpop.f32.mrf.mxu0
    %v325 = vadd.f32 %v169, %v324
    %v326 = vpop.f32.mrf.mxu0
    %v327 = vadd.f32 %v171, %v326
    %328 = vdwg.mxu0
    %329 = vmatpush.bf16.msra.mxu0 0
    %330 = vmatpush.bf16.msra.mxu0 0
    %331 = vmatpush.bf16.msra.mxu0 0
    %332 = vmatpush.bf16.msra.mxu0 0
    %333 = vmatpush.bf16.msra.mxu0 0
    %334 = vmatpush.bf16.msra.mxu0 0
    %335 = vmatpush.bf16.msra.mxu0 0
    %336 = vmatpush.bf16.msra.mxu0 %v296
    %337 = vmatmul.bf16.gmra.mxu0 %v313
    %v338 = vpop.f32.mrf.mxu0
    %v339 = vadd.f32 %v183, %v338
    %v340 = vpop.f32.mrf.mxu0
    %v341 = vadd.f32 %v185, %v340
    %342 = vdwg.mxu0
    %343 = vmatpush.bf16.msra.mxu0 0
    %344 = vmatpush.bf16.msra.mxu0 0
    %345 = vmatpush.bf16.msra.mxu0 0
    %346 = vmatpush.bf16.msra.mxu0 0
    %347 = vmatpush.bf16.msra.mxu0 0
    %348 = vmatpush.bf16.msra.mxu0 0
    %349 = vmatpush.bf16.msra.mxu0 0
    %350 = vmatpush.bf16.msra.mxu0 %v297
    %351 = vmatmul.bf16.gmra.mxu0 %v313
    %v352 = vpop.f32.mrf.mxu0
    %v353 = vadd.f32 %v197, %v352
    %v354 = vpop.f32.mrf.mxu0
    %v355 = vadd.f32 %v199, %v354
    %356 = vdwg.mxu0
    %357 = vmatpush.bf16.msra.mxu0 0
    %358 = vmatpush.bf16.msra.mxu0 0
    %359 = vmatpush.bf16.msra.mxu0 0
    %360 = vmatpush.bf16.msra.mxu0 0
    %361 = vmatpush.bf16.msra.mxu0 0
    %362 = vmatpush.bf16.msra.mxu0 0
    %363 = vmatpush.bf16.msra.mxu0 0
    %364 = vmatpush.bf16.msra.mxu0 %v298
    %365 = vmatmul.bf16.gmra.mxu0 %v313
    %v366 = vpop.f32.mrf.mxu0
    %v367 = vadd.f32 %v211, %v366
    %v368 = vpop.f32.mrf.mxu0
    %v369 = vadd.f32 %v213, %v368
    %370 = vdwg.mxu0
    %371 = vmatpush.bf16.msra.mxu0 0
    %372 = vmatpush.bf16.msra.mxu0 0
    %373 = vmatpush.bf16.msra.mxu0 0
    %374 = vmatpush.bf16.msra.mxu0 0
    %375 = vmatpush.bf16.msra.mxu0 0
    %376 = vmatpush.bf16.msra.mxu0 0
    %377 = vmatpush.bf16.msra.mxu0 0
    %378 = vmatpush.bf16.msra.mxu0 %v299
    %379 = vmatmul.bf16.gmra.mxu0 %v313
    %v380 = vpop.f32.mrf.mxu0
    %v381 = vadd.f32 %v225, %v380
    %v382 = vpop.f32.mrf.mxu0
    %v383 = vadd.f32 %v227, %v382
    %384 = vdwg.mxu0
    %385 = vmatpush.bf16.msra.mxu0 0
    %386 = vmatpush.bf16.msra.mxu0 0
    %387 = vmatpush.bf16.msra.mxu0 0
    %388 = vmatpush.bf16.msra.mxu0 0
    %389 = vmatpush.bf16.msra.mxu0 0
    %390 = vmatpush.bf16.msra.mxu0 0
    %391 = vmatpush.bf16.msra.mxu0 0
    %392 = vmatpush.bf16.msra.mxu0 %v300
    %393 = vmatmul.bf16.gmra.mxu0 %v313
    %v394 = vpop.f32.mrf.mxu0
    %v395 = vadd.f32 %v239, %v394
    %v396 = vpop.f32.mrf.mxu0
    %v397 = vadd.f32 %v241, %v396
    %398 = vdwg.mxu0
    %399 = vmatpush.bf16.msra.mxu0 0
    %400 = vmatpush.bf16.msra.mxu0 0
    %401 = vmatpush.bf16.msra.mxu0 0
    %402 = vmatpush.bf16.msra.mxu0 0
    %403 = vmatpush.bf16.msra.mxu0 0
    %404 = vmatpush.bf16.msra.mxu0 0
    %405 = vmatpush.bf16.msra.mxu0 0
    %406 = vmatpush.bf16.msra.mxu0 %v301
    %407 = vmatmul.bf16.gmra.mxu0 %v313
    %v408 = vpop.f32.mrf.mxu0
    %v409 = vadd.f32 %v253, %v408
    %v410 = vpop.f32.mrf.mxu0
    %v411 = vadd.f32 %v255, %v410
    %412 = vdwg.mxu0
    %413 = vmatpush.bf16.msra.mxu0 0
    %414 = vmatpush.bf16.msra.mxu0 0
    %415 = vmatpush.bf16.msra.mxu0 0
    %416 = vmatpush.bf16.msra.mxu0 0
    %417 = vmatpush.bf16.msra.mxu0 0
    %418 = vmatpush.bf16.msra.mxu0 0
    %419 = vmatpush.bf16.msra.mxu0 0
    %420 = vmatpush.bf16.msra.mxu0 %v302
    %421 = vmatmul.bf16.gmra.mxu0 %v313
    %v422 = vpop.f32.mrf.mxu0
    %v423 = vadd.f32 %v267, %v422
    %v424 = vpop.f32.mrf.mxu0
    %v425 = vadd.f32 %v269, %v424
    %426 = vdwg.mxu0
    %v427 = vld [vmem:[%s4] sm:$0xff]
    %v429 = vperm.slane %v427, 0
    %v430 = vperm.slane %v427, 1
    %v431 = vperm.slane %v427, 2
    %v432 = vperm.slane %v427, 3
    %v433 = vperm.slane %v427, 4
    %v434 = vperm.slane %v427, 5
    %v435 = vperm.slane %v427, 6
    %v436 = vperm.slane %v427, 7
    %v445 = vadd.f32 %v325, %v429
    %v446 = vadd.f32 %v339, %v430
    %v447 = vadd.f32 %v353, %v431
    %v448 = vadd.f32 %v367, %v432
    %v449 = vadd.f32 %v381, %v433
    %v450 = vadd.f32 %v395, %v434
    %v451 = vadd.f32 %v409, %v435
    %v452 = vadd.f32 %v423, %v436
    %v453 = vadd.f32 %v327, %v429
    %v454 = vadd.f32 %v341, %v430
    %v455 = vadd.f32 %v355, %v431
    %v456 = vadd.f32 %v369, %v432
    %v457 = vadd.f32 %v383, %v433
    %v458 = vadd.f32 %v397, %v434
    %v459 = vadd.f32 %v411, %v435
    %v460 = vadd.f32 %v425, %v436
    %v461 = vmax.f32 %v445, 0.0
    %v462 = vmax.f32 %v446, 0.0
    %v463 = vmax.f32 %v447, 0.0
    %v464 = vmax.f32 %v448, 0.0
    %v465 = vmax.f32 %v449, 0.0
    %v466 = vmax.f32 %v450, 0.0
    %v467 = vmax.f32 %v451, 0.0
    %v468 = vmax.f32 %v452, 0.0
    %v469 = vmax.f32 %v453, 0.0
    %v470 = vmax.f32 %v454, 0.0
    %v471 = vmax.f32 %v455, 0.0
    %v472 = vmax.f32 %v456, 0.0
    %v473 = vmax.f32 %v457, 0.0
    %v474 = vmax.f32 %v458, 0.0
    %v475 = vmax.f32 %v459, 0.0
    %v476 = vmax.f32 %v460, 0.0
    %v477 = vpack.c.bf16 %v462, %v461
    %v478 = vpack.c.bf16 %v464, %v463
    %v479 = vpack.c.bf16 %v466, %v465
    %v480 = vpack.c.bf16 %v468, %v467
    %v481 = vpack.c.bf16 %v470, %v469
    %v482 = vpack.c.bf16 %v472, %v471
    %v483 = vpack.c.bf16 %v474, %v473
    %v484 = vpack.c.bf16 %v476, %v475
    %v485 = vld [vmem:[#allocation6] sm:$0xff]
    %v486 = vld [vmem:[#allocation6 + $0x8] sm:$0xf]
    %v487 = vld [vmem:[#allocation6 + $0xc] sm:$0xff]
    %v488 = vld [vmem:[#allocation6 + $0x14] sm:$0xf]
    %v489 = vld [vmem:[#allocation6 + $0x18] sm:$0xff]
    %v490 = vld [vmem:[#allocation6 + $0x20] sm:$0xf]
    %v491 = vld [vmem:[#allocation6 + $0x24] sm:$0xff]
    %v492 = vld [vmem:[#allocation6 + $0x2c] sm:$0xf]
    %v493 = vld [vmem:[#allocation6 + $0x30] sm:$0xff]
    %v494 = vld [vmem:[#allocation6 + $0x38] sm:$0xf]
    %v495 = vld [vmem:[#allocation6 + $0x3c] sm:$0xff]
    %v496 = vld [vmem:[#allocation6 + $0x44] sm:$0xf]
    %v497 = vld [vmem:[#allocation6 + $0x48] sm:$0xff]
    %v498 = vld [vmem:[#allocation6 + $0x50] sm:$0xf]
    %v499 = vld [vmem:[#allocation6 + $0x54] sm:$0xff]
    %v500 = vld [vmem:[#allocation6 + $0x5c] sm:$0xf]
    %v501 = vld [vmem:[#allocation6 + $0x60] sm:$0xff]
    %v502 = vld [vmem:[#allocation6 + $0x68] sm:$0xf]
    %v503 = vld [vmem:[#allocation6 + $0x6c] sm:$0xff]
    %v504 = vld [vmem:[#allocation6 + $0x74] sm:$0xf]
    %v505 = vld [vmem:[#allocation6 + $0x78] sm:$0xff]
    %v506 = vld [vmem:[#allocation6 + $0x80] sm:$0xf]
    %v507 = vld [vmem:[#allocation6 + $0x84] sm:$0xff]
    %v508 = vld [vmem:[#allocation6 + $0x8c] sm:$0xf]
    %v509 = vld [vmem:[#allocation6 + $0x90] sm:$0xff]
    %v510 = vld [vmem:[#allocation6 + $0x98] sm:$0xf]
    %v511 = vld [vmem:[#allocation6 + $0x9c] sm:$0xff]
    %v512 = vld [vmem:[#allocation6 + $0xa4] sm:$0xf]
    %v513 = vld [vmem:[#allocation6 + $0xa8] sm:$0xff]
    %v514 = vld [vmem:[#allocation6 + $0xb0] sm:$0xf]
    %v515 = vld [vmem:[#allocation6 + $0xb4] sm:$0xff]
    %v516 = vld [vmem:[#allocation6 + $0xbc] sm:$0xf]
    %v517 = vld [vmem:[#allocation6 + $0xc0] sm:$0xff]
    %v518 = vld [vmem:[#allocation6 + $0xc8] sm:$0xf]
    %v519 = vld [vmem:[#allocation6 + $0xcc] sm:$0xff]
    %v520 = vld [vmem:[#allocation6 + $0xd4] sm:$0xf]
    %v521 = vld [vmem:[#allocation6 + $0xd8] sm:$0xff]
    %v522 = vld [vmem:[#allocation6 + $0xe0] sm:$0xf]
    %v523 = vld [vmem:[#allocation6 + $0xe4] sm:$0xff]
    %v524 = vld [vmem:[#allocation6 + $0xec] sm:$0xf]
    %v525 = vld [vmem:[#allocation6 + $0xf0] sm:$0xff]
    %v526 = vld [vmem:[#allocation6 + $0xf8] sm:$0xf]
    %v527 = vld [vmem:[#allocation6 + $0xfc] sm:$0xff]
    %v528 = vld [vmem:[#allocation6 + $0x104] sm:$0xf]
    %v529 = vld [vmem:[#allocation6 + $0x108] sm:$0xff]
    %v530 = vld [vmem:[#allocation6 + $0x110] sm:$0xf]
    %v531 = vld [vmem:[#allocation6 + $0x114] sm:$0xff]
    %v532 = vld [vmem:[#allocation6 + $0x11c] sm:$0xf]
    %v533 = vld [vmem:[#allocation6 + $0x120] sm:$0xff]
    %v534 = vld [vmem:[#allocation6 + $0x128] sm:$0xf]
    %v535 = vld [vmem:[#allocation6 + $0x12c] sm:$0xff]
    %v536 = vld [vmem:[#allocation6 + $0x134] sm:$0xf]
    %v537 = vld [vmem:[#allocation6 + $0x138] sm:$0xff]
    %v538 = vld [vmem:[#allocation6 + $0x140] sm:$0xf]
    %v539 = vld [vmem:[#allocation6 + $0x144] sm:$0xff]
    %v540 = vld [vmem:[#allocation6 + $0x14c] sm:$0xf]
    %v541 = vld [vmem:[#allocation6 + $0x150] sm:$0xff]
    %v542 = vld [vmem:[#allocation6 + $0x158] sm:$0xf]
    %v543 = vld [vmem:[#allocation6 + $0x15c] sm:$0xff]
    %v544 = vld [vmem:[#allocation6 + $0x164] sm:$0xf]
    %v545 = vld [vmem:[#allocation6 + $0x168] sm:$0xff]
    %v546 = vld [vmem:[#allocation6 + $0x170] sm:$0xf]
    %v547 = vld [vmem:[#allocation6 + $0x174] sm:$0xff]
    %v548 = vld [vmem:[#allocation6 + $0x17c] sm:$0xf]
    %v549 = vld [vmem:[#allocation6 + $0x180] sm:$0xff]
    %v550 = vld [vmem:[#allocation6 + $0x188] sm:$0xf]
    %v551 = vld [vmem:[#allocation6 + $0x18c] sm:$0xff]
    %v552 = vld [vmem:[#allocation6 + $0x194] sm:$0xf]
    %v553 = vld [vmem:[#allocation6 + $0x198] sm:$0xff]
    %v554 = vld [vmem:[#allocation6 + $0x1a0] sm:$0xf]
    %v555 = vld [vmem:[#allocation6 + $0x1a4] sm:$0xff]
    %v556 = vld [vmem:[#allocation6 + $0x1ac] sm:$0xf]
    %v557 = vld [vmem:[#allocation6 + $0x1b0] sm:$0xff]
    %v558 = vld [vmem:[#allocation6 + $0x1b8] sm:$0xf]
    %v559 = vld [vmem:[#allocation6 + $0x1bc] sm:$0xff]
    %v560 = vld [vmem:[#allocation6 + $0x1c4] sm:$0xf]
    %v561 = vld [vmem:[#allocation6 + $0x1c8] sm:$0xff]
    %v562 = vld [vmem:[#allocation6 + $0x1d0] sm:$0xf]
    %v563 = vld [vmem:[#allocation6 + $0x1d4] sm:$0xff]
    %v564 = vld [vmem:[#allocation6 + $0x1dc] sm:$0xf]
    %v565 = vld [vmem:[#allocation6 + $0x1e0] sm:$0xff]
    %v566 = vld [vmem:[#allocation6 + $0x1e8] sm:$0xf]
    %v567 = vld [vmem:[#allocation6 + $0x1ec] sm:$0xff]
    %v568 = vld [vmem:[#allocation6 + $0x1f4] sm:$0xf]
    %v569 = vld [vmem:[#allocation6 + $0x1f8] sm:$0xff]
    %v570 = vld [vmem:[#allocation6 + $0x200] sm:$0xf]
    %v571 = vld [vmem:[#allocation6 + $0x204] sm:$0xff]
    %v572 = vld [vmem:[#allocation6 + $0x20c] sm:$0xf]
    %v573 = vld [vmem:[#allocation6 + $0x210] sm:$0xff]
    %v574 = vld [vmem:[#allocation6 + $0x218] sm:$0xf]
    %v575 = vld [vmem:[#allocation6 + $0x21c] sm:$0xff]
    %v576 = vld [vmem:[#allocation6 + $0x224] sm:$0xf]
    %v577 = vld [vmem:[#allocation6 + $0x228] sm:$0xff]
    %v578 = vld [vmem:[#allocation6 + $0x230] sm:$0xf]
    %v579 = vld [vmem:[#allocation6 + $0x234] sm:$0xff]
    %v580 = vld [vmem:[#allocation6 + $0x23c] sm:$0xf]
    %v581 = vld [vmem:[#allocation6 + $0x240] sm:$0xff]
    %v582 = vld [vmem:[#allocation6 + $0x248] sm:$0xf]
    %v583 = vld [vmem:[#allocation6 + $0x24c] sm:$0xff]
    %v584 = vld [vmem:[#allocation6 + $0x254] sm:$0xf]
    %v585 = vld [vmem:[#allocation6 + $0x258] sm:$0xff]
    %v586 = vld [vmem:[#allocation6 + $0x260] sm:$0xf]
    %v587 = vld [vmem:[#allocation6 + $0x264] sm:$0xff]
    %v588 = vld [vmem:[#allocation6 + $0x26c] sm:$0xf]
    %v589 = vld [vmem:[#allocation6 + $0x270] sm:$0xff]
    %v590 = vld [vmem:[#allocation6 + $0x278] sm:$0xf]
    %v591 = vld [vmem:[#allocation6 + $0x27c] sm:$0xff]
    %v592 = vld [vmem:[#allocation6 + $0x284] sm:$0xf]
    %v593 = vld [vmem:[#allocation6 + $0x288] sm:$0xff]
    %v594 = vld [vmem:[#allocation6 + $0x290] sm:$0xf]
    %v595 = vld [vmem:[#allocation6 + $0x294] sm:$0xff]
    %v596 = vld [vmem:[#allocation6 + $0x29c] sm:$0xf]
    %v597 = vld [vmem:[#allocation6 + $0x2a0] sm:$0xff]
    %v598 = vld [vmem:[#allocation6 + $0x2a8] sm:$0xf]
    %v599 = vld [vmem:[#allocation6 + $0x2ac] sm:$0xff]
    %v600 = vld [vmem:[#allocation6 + $0x2b4] sm:$0xf]
    %v601 = vld [vmem:[#allocation6 + $0x2b8] sm:$0xff]
    %v602 = vld [vmem:[#allocation6 + $0x2c0] sm:$0xf]
    %v603 = vld [vmem:[#allocation6 + $0x2c4] sm:$0xff]
    %v604 = vld [vmem:[#allocation6 + $0x2cc] sm:$0xf]
    %v605 = vld [vmem:[#allocation6 + $0x2d0] sm:$0xff]
    %v606 = vld [vmem:[#allocation6 + $0x2d8] sm:$0xf]
    %v607 = vld [vmem:[#allocation6 + $0x2dc] sm:$0xff]
    %v608 = vld [vmem:[#allocation6 + $0x2e4] sm:$0xf]
    %v609 = vld [vmem:[#allocation6 + $0x2e8] sm:$0xff]
    %v610 = vld [vmem:[#allocation6 + $0x2f0] sm:$0xf]
    %v611 = vld [vmem:[#allocation6 + $0x2f4] sm:$0xff]
    %v612 = vld [vmem:[#allocation6 + $0x2fc] sm:$0xf]
    %v613 = vld [vmem:[#allocation7] ss:$2 sm:$0x7]
    %v615 = vperm.slane %v613, 0
    %v616 = vperm.slane %v613, 1
    %v617 = vperm.slane %v613, 2
    %v625 = vunpack.c.l.b16 %v477
    %v626 = vunpack.c.h.b16 %v477
    %v627 = vunpack.c.l.b16 %v478
    %v628 = vunpack.c.h.b16 %v478
    %v629 = vunpack.c.l.b16 %v481
    %v630 = vunpack.c.h.b16 %v481
    %v631 = vunpack.c.l.b16 %v482
    %v632 = vunpack.c.h.b16 %v482
    %v633 = vpack.c.b16 %v629, %v625
    %v634 = vpack.c.b16 %v630, %v626
    %v635 = vpack.c.b16 %v631, %v627
    %v636 = vpack.c.b16 %v632, %v628
    %v769 = vunpack.c.l.b16 %v485
    %v770 = vunpack.c.h.b16 %v485
    %v771 = vunpack.c.l.b16 %v486
    %v772 = vunpack.c.l.b16 %v487
    %v773 = vunpack.c.h.b16 %v487
    %v774 = vunpack.c.l.b16 %v488
    %v775 = vunpack.c.l.b16 %v489
    %v776 = vunpack.c.h.b16 %v489
    %v777 = vunpack.c.l.b16 %v490
    %v778 = vunpack.c.l.b16 %v491
    %v779 = vunpack.c.h.b16 %v491
    %v780 = vunpack.c.l.b16 %v492
    %v781 = vunpack.c.l.b16 %v493
    %v782 = vunpack.c.h.b16 %v493
    %v783 = vunpack.c.l.b16 %v494
    %v784 = vunpack.c.l.b16 %v495
    %v785 = vunpack.c.h.b16 %v495
    %v786 = vunpack.c.l.b16 %v496
    %v787 = vunpack.c.l.b16 %v497
    %v788 = vunpack.c.h.b16 %v497
    %v789 = vunpack.c.l.b16 %v498
    %v790 = vunpack.c.l.b16 %v499
    %v791 = vunpack.c.h.b16 %v499
    %v792 = vunpack.c.l.b16 %v500
    %v793 = vunpack.c.l.b16 %v501
    %v794 = vunpack.c.h.b16 %v501
    %v795 = vunpack.c.l.b16 %v502
    %v796 = vunpack.c.l.b16 %v503
    %v797 = vunpack.c.h.b16 %v503
    %v798 = vunpack.c.l.b16 %v504
    %v799 = vunpack.c.l.b16 %v505
    %v800 = vunpack.c.h.b16 %v505
    %v801 = vunpack.c.l.b16 %v506
    %v802 = vunpack.c.l.b16 %v507
    %v803 = vunpack.c.h.b16 %v507
    %v804 = vunpack.c.l.b16 %v508
    %v805 = vunpack.c.l.b16 %v509
    %v806 = vunpack.c.h.b16 %v509
    %v807 = vunpack.c.l.b16 %v510
    %v808 = vunpack.c.l.b16 %v511
    %v809 = vunpack.c.h.b16 %v511
    %v810 = vunpack.c.l.b16 %v512
    %v811 = vunpack.c.l.b16 %v513
    %v812 = vunpack.c.h.b16 %v513
    %v813 = vunpack.c.l.b16 %v514
    %v814 = vunpack.c.l.b16 %v515
    %v815 = vunpack.c.h.b16 %v515
    %v816 = vunpack.c.l.b16 %v516
    %v817 = vunpack.c.l.b16 %v517
    %v818 = vunpack.c.h.b16 %v517
    %v819 = vunpack.c.l.b16 %v518
    %v820 = vunpack.c.l.b16 %v519
    %v821 = vunpack.c.h.b16 %v519
    %v822 = vunpack.c.l.b16 %v520
    %v823 = vunpack.c.l.b16 %v521
    %v824 = vunpack.c.h.b16 %v521
    %v825 = vunpack.c.l.b16 %v522
    %v826 = vunpack.c.l.b16 %v523
    %v827 = vunpack.c.h.b16 %v523
    %v828 = vunpack.c.l.b16 %v524
    %v829 = vunpack.c.l.b16 %v525
    %v830 = vunpack.c.h.b16 %v525
    %v831 = vunpack.c.l.b16 %v526
    %v832 = vunpack.c.l.b16 %v527
    %v833 = vunpack.c.h.b16 %v527
    %v834 = vunpack.c.l.b16 %v528
    %v835 = vunpack.c.l.b16 %v529
    %v836 = vunpack.c.h.b16 %v529
    %v837 = vunpack.c.l.b16 %v530
    %v838 = vunpack.c.l.b16 %v531
    %v839 = vunpack.c.h.b16 %v531
    %v840 = vunpack.c.l.b16 %v532
    %v841 = vunpack.c.l.b16 %v533
    %v842 = vunpack.c.h.b16 %v533
    %v843 = vunpack.c.l.b16 %v534
    %v844 = vunpack.c.l.b16 %v535
    %v845 = vunpack.c.h.b16 %v535
    %v846 = vunpack.c.l.b16 %v536
    %v847 = vunpack.c.l.b16 %v537
    %v848 = vunpack.c.h.b16 %v537
    %v849 = vunpack.c.l.b16 %v538
    %v850 = vunpack.c.l.b16 %v539
    %v851 = vunpack.c.h.b16 %v539
    %v852 = vunpack.c.l.b16 %v540
    %v853 = vunpack.c.l.b16 %v541
    %v854 = vunpack.c.h.b16 %v541
    %v855 = vunpack.c.l.b16 %v542
    %v856 = vunpack.c.l.b16 %v543
    %v857 = vunpack.c.h.b16 %v543
    %v858 = vunpack.c.l.b16 %v544
    %v859 = vunpack.c.l.b16 %v545
    %v860 = vunpack.c.h.b16 %v545
    %v861 = vunpack.c.l.b16 %v546
    %v862 = vunpack.c.l.b16 %v547
    %v863 = vunpack.c.h.b16 %v547
    %v864 = vunpack.c.l.b16 %v548
    %v865 = vunpack.c.l.b16 %v549
    %v866 = vunpack.c.h.b16 %v549
    %v867 = vunpack.c.l.b16 %v550
    %v868 = vunpack.c.l.b16 %v551
    %v869 = vunpack.c.h.b16 %v551
    %v870 = vunpack.c.l.b16 %v552
    %v871 = vunpack.c.l.b16 %v553
    %v872 = vunpack.c.h.b16 %v553
    %v873 = vunpack.c.l.b16 %v554
    %v874 = vunpack.c.l.b16 %v555
    %v875 = vunpack.c.h.b16 %v555
    %v876 = vunpack.c.l.b16 %v556
    %v877 = vunpack.c.l.b16 %v557
    %v878 = vunpack.c.h.b16 %v557
    %v879 = vunpack.c.l.b16 %v558
    %v880 = vunpack.c.l.b16 %v559
    %v881 = vunpack.c.h.b16 %v559
    %v882 = vunpack.c.l.b16 %v560
    %v883 = vunpack.c.l.b16 %v561
    %v884 = vunpack.c.h.b16 %v561
    %v885 = vunpack.c.l.b16 %v562
    %v886 = vunpack.c.l.b16 %v563
    %v887 = vunpack.c.h.b16 %v563
    %v888 = vunpack.c.l.b16 %v564
    %v889 = vunpack.c.l.b16 %v565
    %v890 = vunpack.c.h.b16 %v565
    %v891 = vunpack.c.l.b16 %v566
    %v892 = vunpack.c.l.b16 %v567
    %v893 = vunpack.c.h.b16 %v567
    %v894 = vunpack.c.l.b16 %v568
    %v895 = vunpack.c.l.b16 %v569
    %v896 = vunpack.c.h.b16 %v569
    %v897 = vunpack.c.l.b16 %v570
    %v898 = vunpack.c.l.b16 %v571
    %v899 = vunpack.c.h.b16 %v571
    %v900 = vunpack.c.l.b16 %v572
    %v901 = vunpack.c.l.b16 %v573
    %v902 = vunpack.c.h.b16 %v573
    %v903 = vunpack.c.l.b16 %v574
    %v904 = vunpack.c.l.b16 %v575
    %v905 = vunpack.c.h.b16 %v575
    %v906 = vunpack.c.l.b16 %v576
    %v907 = vunpack.c.l.b16 %v577
    %v908 = vunpack.c.h.b16 %v577
    %v909 = vunpack.c.l.b16 %v578
    %v910 = vunpack.c.l.b16 %v579
    %v911 = vunpack.c.h.b16 %v579
    %v912 = vunpack.c.l.b16 %v580
    %v913 = vunpack.c.l.b16 %v581
    %v914 = vunpack.c.h.b16 %v581
    %v915 = vunpack.c.l.b16 %v582
    %v916 = vunpack.c.l.b16 %v583
    %v917 = vunpack.c.h.b16 %v583
    %v918 = vunpack.c.l.b16 %v584
    %v919 = vunpack.c.l.b16 %v585
    %v920 = vunpack.c.h.b16 %v585
    %v921 = vunpack.c.l.b16 %v586
    %v922 = vunpack.c.l.b16 %v587
    %v923 = vunpack.c.h.b16 %v587
    %v924 = vunpack.c.l.b16 %v588
    %v925 = vunpack.c.l.b16 %v589
    %v926 = vunpack.c.h.b16 %v589
    %v927 = vunpack.c.l.b16 %v590
    %v928 = vunpack.c.l.b16 %v591
    %v929 = vunpack.c.h.b16 %v591
    %v930 = vunpack.c.l.b16 %v592
    %v931 = vunpack.c.l.b16 %v593
    %v932 = vunpack.c.h.b16 %v593
    %v933 = vunpack.c.l.b16 %v594
    %v934 = vunpack.c.l.b16 %v595
    %v935 = vunpack.c.h.b16 %v595
    %v936 = vunpack.c.l.b16 %v596
    %v937 = vunpack.c.l.b16 %v597
    %v938 = vunpack.c.h.b16 %v597
    %v939 = vunpack.c.l.b16 %v598
    %v940 = vunpack.c.l.b16 %v599
    %v941 = vunpack.c.h.b16 %v599
    %v942 = vunpack.c.l.b16 %v600
    %v943 = vunpack.c.l.b16 %v601
    %v944 = vunpack.c.h.b16 %v601
    %v945 = vunpack.c.l.b16 %v602
    %v946 = vunpack.c.l.b16 %v603
    %v947 = vunpack.c.h.b16 %v603
    %v948 = vunpack.c.l.b16 %v604
    %v949 = vunpack.c.l.b16 %v605
    %v950 = vunpack.c.h.b16 %v605
    %v951 = vunpack.c.l.b16 %v606
    %v952 = vunpack.c.l.b16 %v607
    %v953 = vunpack.c.h.b16 %v607
    %v954 = vunpack.c.l.b16 %v608
    %v955 = vunpack.c.l.b16 %v609
    %v956 = vunpack.c.h.b16 %v609
    %v957 = vunpack.c.l.b16 %v610
    %v958 = vunpack.c.l.b16 %v611
    %v959 = vunpack.c.h.b16 %v611
    %v960 = vunpack.c.l.b16 %v612
    %v961 = vpack.c.b16 %v772, %v769
    %v962 = vpack.c.b16 %v773, %v770
    %v963 = vpack.c.b16 %v774, %v771
    %v964 = vpack.c.b16 %v778, %v775
    %v965 = vpack.c.b16 %v779, %v776
    %v966 = vpack.c.b16 %v780, %v777
    %v967 = vpack.c.b16 %v784, %v781
    %v968 = vpack.c.b16 %v785, %v782
    %v969 = vpack.c.b16 %v786, %v783
    %v970 = vpack.c.b16 %v790, %v787
    %v971 = vpack.c.b16 %v791, %v788
    %v972 = vpack.c.b16 %v792, %v789
    %v973 = vpack.c.b16 %v796, %v793
    %v974 = vpack.c.b16 %v797, %v794
    %v975 = vpack.c.b16 %v798, %v795
    %v976 = vpack.c.b16 %v802, %v799
    %v977 = vpack.c.b16 %v803, %v800
    %v978 = vpack.c.b16 %v804, %v801
    %v979 = vpack.c.b16 %v808, %v805
    %v980 = vpack.c.b16 %v809, %v806
    %v981 = vpack.c.b16 %v810, %v807
    %v982 = vpack.c.b16 %v814, %v811
    %v983 = vpack.c.b16 %v815, %v812
    %v984 = vpack.c.b16 %v816, %v813
    %v985 = vpack.c.b16 %v820, %v817
    %v986 = vpack.c.b16 %v821, %v818
    %v987 = vpack.c.b16 %v822, %v819
    %v988 = vpack.c.b16 %v826, %v823
    %v989 = vpack.c.b16 %v827, %v824
    %v990 = vpack.c.b16 %v828, %v825
    %v991 = vpack.c.b16 %v832, %v829
    %v992 = vpack.c.b16 %v833, %v830
    %v993 = vpack.c.b16 %v834, %v831
    %v994 = vpack.c.b16 %v838, %v835
    %v995 = vpack.c.b16 %v839, %v836
    %v996 = vpack.c.b16 %v840, %v837
    %v997 = vpack.c.b16 %v844, %v841
    %v998 = vpack.c.b16 %v845, %v842
    %v999 = vpack.c.b16 %v846, %v843
    %v1000 = vpack.c.b16 %v850, %v847
    %v1001 = vpack.c.b16 %v851, %v848
    %v1002 = vpack.c.b16 %v852, %v849
    %v1003 = vpack.c.b16 %v856, %v853
    %v1004 = vpack.c.b16 %v857, %v854
    %v1005 = vpack.c.b16 %v858, %v855
    %v1006 = vpack.c.b16 %v862, %v859
    %v1007 = vpack.c.b16 %v863, %v860
    %v1008 = vpack.c.b16 %v864, %v861
    %v1009 = vpack.c.b16 %v868, %v865
    %v1010 = vpack.c.b16 %v869, %v866
    %v1011 = vpack.c.b16 %v870, %v867
    %v1012 = vpack.c.b16 %v874, %v871
    %v1013 = vpack.c.b16 %v875, %v872
    %v1014 = vpack.c.b16 %v876, %v873
    %v1015 = vpack.c.b16 %v880, %v877
    %v1016 = vpack.c.b16 %v881, %v878
    %v1017 = vpack.c.b16 %v882, %v879
    %v1018 = vpack.c.b16 %v886, %v883
    %v1019 = vpack.c.b16 %v887, %v884
    %v1020 = vpack.c.b16 %v888, %v885
    %v1021 = vpack.c.b16 %v892, %v889
    %v1022 = vpack.c.b16 %v893, %v890
    %v1023 = vpack.c.b16 %v894, %v891
    %v1024 = vpack.c.b16 %v898, %v895
    %v1025 = vpack.c.b16 %v899, %v896
    %v1026 = vpack.c.b16 %v900, %v897
    %v1027 = vpack.c.b16 %v904, %v901
    %v1028 = vpack.c.b16 %v905, %v902
    %v1029 = vpack.c.b16 %v906, %v903
    %v1030 = vpack.c.b16 %v910, %v907
    %v1031 = vpack.c.b16 %v911, %v908
    %v1032 = vpack.c.b16 %v912, %v909
    %v1033 = vpack.c.b16 %v916, %v913
    %v1034 = vpack.c.b16 %v917, %v914
    %v1035 = vpack.c.b16 %v918, %v915
    %v1036 = vpack.c.b16 %v922, %v919
    %v1037 = vpack.c.b16 %v923, %v920
    %v1038 = vpack.c.b16 %v924, %v921
    %v1039 = vpack.c.b16 %v928, %v925
    %v1040 = vpack.c.b16 %v929, %v926
    %v1041 = vpack.c.b16 %v930, %v927
    %v1042 = vpack.c.b16 %v934, %v931
    %v1043 = vpack.c.b16 %v935, %v932
    %v1044 = vpack.c.b16 %v936, %v933
    %v1045 = vpack.c.b16 %v940, %v937
    %v1046 = vpack.c.b16 %v941, %v938
    %v1047 = vpack.c.b16 %v942, %v939
    %v1048 = vpack.c.b16 %v946, %v943
    %v1049 = vpack.c.b16 %v947, %v944
    %v1050 = vpack.c.b16 %v948, %v945
    %v1051 = vpack.c.b16 %v952, %v949
    %v1052 = vpack.c.b16 %v953, %v950
    %v1053 = vpack.c.b16 %v954, %v951
    %v1054 = vpack.c.b16 %v958, %v955
    %v1055 = vpack.c.b16 %v959, %v956
    %v1056 = vpack.c.b16 %v960, %v957
    %1153 = vmatpush.bf16.msra.mxu0 %v982
    %1154 = vmatpush.bf16.msra.mxu0 %v979
    %1155 = vmatpush.bf16.msra.mxu0 %v976
    %1156 = vmatpush.bf16.msra.mxu0 %v973
    %1157 = vmatpush.bf16.msra.mxu0 %v970
    %1158 = vmatpush.bf16.msra.mxu0 %v967
    %1159 = vmatpush.bf16.msra.mxu0 %v964
    %1160 = vmatpush.bf16.msra.mxu0 %v961
    %1161 = vmatmul.bf16.gmra.mxu0 %v633
    %v1162 = vpop.f32.mrf.mxu0
    %v1163 = vadd.f32 %v615, %v1162
    %v1164 = vpop.f32.mrf.mxu0
    %v1165 = vadd.f32 %v615, %v1164
    %1166 = vdwg.mxu0
    %1167 = vmatpush.bf16.msra.mxu0 %v1006
    %1168 = vmatpush.bf16.msra.mxu0 %v1003
    %1169 = vmatpush.bf16.msra.mxu0 %v1000
    %1170 = vmatpush.bf16.msra.mxu0 %v997
    %1171 = vmatpush.bf16.msra.mxu0 %v994
    %1172 = vmatpush.bf16.msra.mxu0 %v991
    %1173 = vmatpush.bf16.msra.mxu0 %v988
    %1174 = vmatpush.bf16.msra.mxu0 %v985
    %1175 = vmatmul.bf16.gmra.mxu0 %v634
    %v1176 = vpop.f32.mrf.mxu0
    %v1177 = vadd.f32 %v1163, %v1176
    %v1178 = vpop.f32.mrf.mxu0
    %v1179 = vadd.f32 %v1165, %v1178
    %1180 = vdwg.mxu0
    %1181 = vmatpush.bf16.msra.mxu0 %v1030
    %1182 = vmatpush.bf16.msra.mxu0 %v1027
    %1183 = vmatpush.bf16.msra.mxu0 %v1024
    %1184 = vmatpush.bf16.msra.mxu0 %v1021
    %1185 = vmatpush.bf16.msra.mxu0 %v1018
    %1186 = vmatpush.bf16.msra.mxu0 %v1015
    %1187 = vmatpush.bf16.msra.mxu0 %v1012
    %1188 = vmatpush.bf16.msra.mxu0 %v1009
    %1189 = vmatmul.bf16.gmra.mxu0 %v635
    %v1190 = vpop.f32.mrf.mxu0
    %v1191 = vadd.f32 %v1177, %v1190
    %v1192 = vpop.f32.mrf.mxu0
    %v1193 = vadd.f32 %v1179, %v1192
    %1194 = vdwg.mxu0
    %1195 = vmatpush.bf16.msra.mxu0 %v1054
    %1196 = vmatpush.bf16.msra.mxu0 %v1051
    %1197 = vmatpush.bf16.msra.mxu0 %v1048
    %1198 = vmatpush.bf16.msra.mxu0 %v1045
    %1199 = vmatpush.bf16.msra.mxu0 %v1042
    %1200 = vmatpush.bf16.msra.mxu0 %v1039
    %1201 = vmatpush.bf16.msra.mxu0 %v1036
    %1202 = vmatpush.bf16.msra.mxu0 %v1033
    %1203 = vmatmul.bf16.gmra.mxu0 %v636
    %v1204 = vpop.f32.mrf.mxu0
    %v1205 = vadd.f32 %v1191, %v1204
    %v1206 = vpop.f32.mrf.mxu0
    %v1207 = vadd.f32 %v1193, %v1206
    %1208 = vdwg.mxu0
    %1209 = vmatpush.bf16.msra.mxu0 %v983
    %1210 = vmatpush.bf16.msra.mxu0 %v980
    %1211 = vmatpush.bf16.msra.mxu0 %v977
    %1212 = vmatpush.bf16.msra.mxu0 %v974
    %1213 = vmatpush.bf16.msra.mxu0 %v971
    %1214 = vmatpush.bf16.msra.mxu0 %v968
    %1215 = vmatpush.bf16.msra.mxu0 %v965
    %1216 = vmatpush.bf16.msra.mxu0 %v962
    %1217 = vmatmul.bf16.gmra.mxu0 %v633
    %v1218 = vpop.f32.mrf.mxu0
    %v1219 = vadd.f32 %v616, %v1218
    %v1220 = vpop.f32.mrf.mxu0
    %v1221 = vadd.f32 %v616, %v1220
    %1222 = vdwg.mxu0
    %1223 = vmatpush.bf16.msra.mxu0 %v1007
    %1224 = vmatpush.bf16.msra.mxu0 %v1004
    %1225 = vmatpush.bf16.msra.mxu0 %v1001
    %1226 = vmatpush.bf16.msra.mxu0 %v998
    %1227 = vmatpush.bf16.msra.mxu0 %v995
    %1228 = vmatpush.bf16.msra.mxu0 %v992
    %1229 = vmatpush.bf16.msra.mxu0 %v989
    %1230 = vmatpush.bf16.msra.mxu0 %v986
    %1231 = vmatmul.bf16.gmra.mxu0 %v634
    %v1232 = vpop.f32.mrf.mxu0
    %v1233 = vadd.f32 %v1219, %v1232
    %v1234 = vpop.f32.mrf.mxu0
    %v1235 = vadd.f32 %v1221, %v1234
    %1236 = vdwg.mxu0
    %1237 = vmatpush.bf16.msra.mxu0 %v1031
    %1238 = vmatpush.bf16.msra.mxu0 %v1028
    %1239 = vmatpush.bf16.msra.mxu0 %v1025
    %1240 = vmatpush.bf16.msra.mxu0 %v1022
    %1241 = vmatpush.bf16.msra.mxu0 %v1019
    %1242 = vmatpush.bf16.msra.mxu0 %v1016
    %1243 = vmatpush.bf16.msra.mxu0 %v1013
    %1244 = vmatpush.bf16.msra.mxu0 %v1010
    %1245 = vmatmul.bf16.gmra.mxu0 %v635
    %v1246 = vpop.f32.mrf.mxu0
    %v1247 = vadd.f32 %v1233, %v1246
    %v1248 = vpop.f32.mrf.mxu0
    %v1249 = vadd.f32 %v1235, %v1248
    %1250 = vdwg.mxu0
    %1251 = vmatpush.bf16.msra.mxu0 %v1055
    %1252 = vmatpush.bf16.msra.mxu0 %v1052
    %1253 = vmatpush.bf16.msra.mxu0 %v1049
    %1254 = vmatpush.bf16.msra.mxu0 %v1046
    %1255 = vmatpush.bf16.msra.mxu0 %v1043
    %1256 = vmatpush.bf16.msra.mxu0 %v1040
    %1257 = vmatpush.bf16.msra.mxu0 %v1037
    %1258 = vmatpush.bf16.msra.mxu0 %v1034
    %1259 = vmatmul.bf16.gmra.mxu0 %v636
    %v1260 = vpop.f32.mrf.mxu0
    %v1261 = vadd.f32 %v1247, %v1260
    %v1262 = vpop.f32.mrf.mxu0
    %v1263 = vadd.f32 %v1249, %v1262
    %1264 = vdwg.mxu0
    %1265 = vmatpush.bf16.msra.mxu0 %v984
    %1266 = vmatpush.bf16.msra.mxu0 %v981
    %1267 = vmatpush.bf16.msra.mxu0 %v978
    %1268 = vmatpush.bf16.msra.mxu0 %v975
    %1269 = vmatpush.bf16.msra.mxu0 %v972
    %1270 = vmatpush.bf16.msra.mxu0 %v969
    %1271 = vmatpush.bf16.msra.mxu0 %v966
    %1272 = vmatpush.bf16.msra.mxu0 %v963
    %1273 = vmatmul.bf16.gmra.mxu0 %v633
    %v1274 = vpop.f32.mrf.mxu0
    %v1275 = vadd.f32 %v617, %v1274
    %v1276 = vpop.f32.mrf.mxu0
    %v1277 = vadd.f32 %v617, %v1276
    %1278 = vdwg.mxu0
    %1279 = vmatpush.bf16.msra.mxu0 %v1008
    %1280 = vmatpush.bf16.msra.mxu0 %v1005
    %1281 = vmatpush.bf16.msra.mxu0 %v1002
    %1282 = vmatpush.bf16.msra.mxu0 %v999
    %1283 = vmatpush.bf16.msra.mxu0 %v996
    %1284 = vmatpush.bf16.msra.mxu0 %v993
    %1285 = vmatpush.bf16.msra.mxu0 %v990
    %1286 = vmatpush.bf16.msra.mxu0 %v987
    %1287 = vmatmul.bf16.gmra.mxu0 %v634
    %v1288 = vpop.f32.mrf.mxu0
    %v1289 = vadd.f32 %v1275, %v1288
    %v1290 = vpop.f32.mrf.mxu0
    %v1291 = vadd.f32 %v1277, %v1290
    %1292 = vdwg.mxu0
    %1293 = vmatpush.bf16.msra.mxu0 %v1032
    %1294 = vmatpush.bf16.msra.mxu0 %v1029
    %1295 = vmatpush.bf16.msra.mxu0 %v1026
    %1296 = vmatpush.bf16.msra.mxu0 %v1023
    %1297 = vmatpush.bf16.msra.mxu0 %v1020
    %1298 = vmatpush.bf16.msra.mxu0 %v1017
    %1299 = vmatpush.bf16.msra.mxu0 %v1014
    %1300 = vmatpush.bf16.msra.mxu0 %v1011
    %1301 = vmatmul.bf16.gmra.mxu0 %v635
    %v1302 = vpop.f32.mrf.mxu0
    %v1303 = vadd.f32 %v1289, %v1302
    %v1304 = vpop.f32.mrf.mxu0
    %v1305 = vadd.f32 %v1291, %v1304
    %1306 = vdwg.mxu0
    %1307 = vmatpush.bf16.msra.mxu0 %v1056
    %1308 = vmatpush.bf16.msra.mxu0 %v1053
    %1309 = vmatpush.bf16.msra.mxu0 %v1050
    %1310 = vmatpush.bf16.msra.mxu0 %v1047
    %1311 = vmatpush.bf16.msra.mxu0 %v1044
    %1312 = vmatpush.bf16.msra.mxu0 %v1041
    %1313 = vmatpush.bf16.msra.mxu0 %v1038
    %1314 = vmatpush.bf16.msra.mxu0 %v1035
    %1315 = vmatmul.bf16.gmra.mxu0 %v636
    %v1316 = vpop.f32.mrf.mxu0
    %v1317 = vadd.f32 %v1303, %v1316
    %v1318 = vpop.f32.mrf.mxu0
    %v1319 = vadd.f32 %v1305, %v1318
    %1320 = vdwg.mxu0
    %v1321 = vmax.f32 %v1205, 0.0
    %v1322 = vmax.f32 %v1261, 0.0
    %v1323 = vmax.f32 %v1317, 0.0
    %v1324 = vmax.f32 %v1207, 0.0
    %v1325 = vmax.f32 %v1263, 0.0
    %v1326 = vmax.f32 %v1319, 0.0
    %v1327 = vld [vmem:[%s7] ss:$2 sm:$0x7]
    %v1329 = vperm.slane %v1327, 0
    %v1330 = vperm.slane %v1327, 1
    %v1331 = vperm.slane %v1327, 2
    %v1335 = vmul.f32 %v1321, %v1329
    %v1336 = vmul.f32 %v1322, %v1330
    %v1337 = vmul.f32 %v1323, %v1331
    %v1338 = vmul.f32 %v1324, %v1329
    %v1339 = vmul.f32 %v1325, %v1330
    %v1340 = vmul.f32 %v1326, %v1331
    %v1341 = vadd.f32 %v1335, %v1336
    %v1342 = vadd.f32 %v1341, %v1337
    %1343 = vadd.xlane.f32.xlu0 %v1342
    %v1344 = vpop.xlane.xlu0 %1343
    %v1345 = vadd.f32 %v1338, %v1339
    %v1346 = vadd.f32 %v1345, %v1340
    %1347 = vadd.xlane.f32.xlu0 %v1346
    %v1348 = vpop.xlane.xlu0 %1347
    %s1349 = scalar_lea.vmem [#allocation6], 768
    %v1350 = vld [vmem:[%s1349] sm:$0xff]
    %v1351 = vld [vmem:[%s1349 + $0x8] sm:$0xf]
    %v1352 = vld [vmem:[%s1349 + $0xc] sm:$0xff]
    %v1353 = vld [vmem:[%s1349 + $0x14] sm:$0xf]
    %v1354 = vld [vmem:[%s1349 + $0x18] sm:$0xff]
    %v1355 = vld [vmem:[%s1349 + $0x20] sm:$0xf]
    %v1356 = vld [vmem:[%s1349 + $0x24] sm:$0xff]
    %v1357 = vld [vmem:[%s1349 + $0x2c] sm:$0xf]
    %v1358 = vld [vmem:[%s1349 + $0x30] sm:$0xff]
    %v1359 = vld [vmem:[%s1349 + $0x38] sm:$0xf]
    %v1360 = vld [vmem:[%s1349 + $0x3c] sm:$0xff]
    %v1361 = vld [vmem:[%s1349 + $0x44] sm:$0xf]
    %v1362 = vld [vmem:[%s1349 + $0x48] sm:$0xff]
    %v1363 = vld [vmem:[%s1349 + $0x50] sm:$0xf]
    %v1364 = vld [vmem:[%s1349 + $0x54] sm:$0xff]
    %v1365 = vld [vmem:[%s1349 + $0x5c] sm:$0xf]
    %v1366 = vld [vmem:[%s1349 + $0x60] sm:$0xff]
    %v1367 = vld [vmem:[%s1349 + $0x68] sm:$0xf]
    %v1368 = vld [vmem:[%s1349 + $0x6c] sm:$0xff]
    %v1369 = vld [vmem:[%s1349 + $0x74] sm:$0xf]
    %v1370 = vld [vmem:[%s1349 + $0x78] sm:$0xff]
    %v1371 = vld [vmem:[%s1349 + $0x80] sm:$0xf]
    %v1372 = vld [vmem:[%s1349 + $0x84] sm:$0xff]
    %v1373 = vld [vmem:[%s1349 + $0x8c] sm:$0xf]
    %v1374 = vld [vmem:[%s1349 + $0x90] sm:$0xff]
    %v1375 = vld [vmem:[%s1349 + $0x98] sm:$0xf]
    %v1376 = vld [vmem:[%s1349 + $0x9c] sm:$0xff]
    %v1377 = vld [vmem:[%s1349 + $0xa4] sm:$0xf]
    %v1378 = vld [vmem:[%s1349 + $0xa8] sm:$0xff]
    %v1379 = vld [vmem:[%s1349 + $0xb0] sm:$0xf]
    %v1380 = vld [vmem:[%s1349 + $0xb4] sm:$0xff]
    %v1381 = vld [vmem:[%s1349 + $0xbc] sm:$0xf]
    %v1382 = vld [vmem:[%s1349 + $0xc0] sm:$0xff]
    %v1383 = vld [vmem:[%s1349 + $0xc8] sm:$0xf]
    %v1384 = vld [vmem:[%s1349 + $0xcc] sm:$0xff]
    %v1385 = vld [vmem:[%s1349 + $0xd4] sm:$0xf]
    %v1386 = vld [vmem:[%s1349 + $0xd8] sm:$0xff]
    %v1387 = vld [vmem:[%s1349 + $0xe0] sm:$0xf]
    %v1388 = vld [vmem:[%s1349 + $0xe4] sm:$0xff]
    %v1389 = vld [vmem:[%s1349 + $0xec] sm:$0xf]
    %v1390 = vld [vmem:[%s1349 + $0xf0] sm:$0xff]
    %v1391 = vld [vmem:[%s1349 + $0xf8] sm:$0xf]
    %v1392 = vld [vmem:[%s1349 + $0xfc] sm:$0xff]
    %v1393 = vld [vmem:[%s1349 + $0x104] sm:$0xf]
    %v1394 = vld [vmem:[%s1349 + $0x108] sm:$0xff]
    %v1395 = vld [vmem:[%s1349 + $0x110] sm:$0xf]
    %v1396 = vld [vmem:[%s1349 + $0x114] sm:$0xff]
    %v1397 = vld [vmem:[%s1349 + $0x11c] sm:$0xf]
    %v1398 = vld [vmem:[%s1349 + $0x120] sm:$0xff]
    %v1399 = vld [vmem:[%s1349 + $0x128] sm:$0xf]
    %v1400 = vld [vmem:[%s1349 + $0x12c] sm:$0xff]
    %v1401 = vld [vmem:[%s1349 + $0x134] sm:$0xf]
    %v1402 = vld [vmem:[%s1349 + $0x138] sm:$0xff]
    %v1403 = vld [vmem:[%s1349 + $0x140] sm:$0xf]
    %v1404 = vld [vmem:[%s1349 + $0x144] sm:$0xff]
    %v1405 = vld [vmem:[%s1349 + $0x14c] sm:$0xf]
    %v1406 = vld [vmem:[%s1349 + $0x150] sm:$0xff]
    %v1407 = vld [vmem:[%s1349 + $0x158] sm:$0xf]
    %v1408 = vld [vmem:[%s1349 + $0x15c] sm:$0xff]
    %v1409 = vld [vmem:[%s1349 + $0x164] sm:$0xf]
    %v1410 = vld [vmem:[%s1349 + $0x168] sm:$0xff]
    %v1411 = vld [vmem:[%s1349 + $0x170] sm:$0xf]
    %v1412 = vld [vmem:[%s1349 + $0x174] sm:$0xff]
    %v1413 = vld [vmem:[%s1349 + $0x17c] sm:$0xf]
    %v1414 = vld [vmem:[%s1349 + $0x180] sm:$0xff]
    %v1415 = vld [vmem:[%s1349 + $0x188] sm:$0xf]
    %v1416 = vld [vmem:[%s1349 + $0x18c] sm:$0xff]
    %v1417 = vld [vmem:[%s1349 + $0x194] sm:$0xf]
    %v1418 = vld [vmem:[%s1349 + $0x198] sm:$0xff]
    %v1419 = vld [vmem:[%s1349 + $0x1a0] sm:$0xf]
    %v1420 = vld [vmem:[%s1349 + $0x1a4] sm:$0xff]
    %v1421 = vld [vmem:[%s1349 + $0x1ac] sm:$0xf]
    %v1422 = vld [vmem:[%s1349 + $0x1b0] sm:$0xff]
    %v1423 = vld [vmem:[%s1349 + $0x1b8] sm:$0xf]
    %v1424 = vld [vmem:[%s1349 + $0x1bc] sm:$0xff]
    %v1425 = vld [vmem:[%s1349 + $0x1c4] sm:$0xf]
    %v1426 = vld [vmem:[%s1349 + $0x1c8] sm:$0xff]
    %v1427 = vld [vmem:[%s1349 + $0x1d0] sm:$0xf]
    %v1428 = vld [vmem:[%s1349 + $0x1d4] sm:$0xff]
    %v1429 = vld [vmem:[%s1349 + $0x1dc] sm:$0xf]
    %v1430 = vld [vmem:[%s1349 + $0x1e0] sm:$0xff]
    %v1431 = vld [vmem:[%s1349 + $0x1e8] sm:$0xf]
    %v1432 = vld [vmem:[%s1349 + $0x1ec] sm:$0xff]
    %v1433 = vld [vmem:[%s1349 + $0x1f4] sm:$0xf]
    %v1434 = vld [vmem:[%s1349 + $0x1f8] sm:$0xff]
    %v1435 = vld [vmem:[%s1349 + $0x200] sm:$0xf]
    %v1436 = vld [vmem:[%s1349 + $0x204] sm:$0xff]
    %v1437 = vld [vmem:[%s1349 + $0x20c] sm:$0xf]
    %v1438 = vld [vmem:[%s1349 + $0x210] sm:$0xff]
    %v1439 = vld [vmem:[%s1349 + $0x218] sm:$0xf]
    %v1440 = vld [vmem:[%s1349 + $0x21c] sm:$0xff]
    %v1441 = vld [vmem:[%s1349 + $0x224] sm:$0xf]
    %v1442 = vld [vmem:[%s1349 + $0x228] sm:$0xff]
    %v1443 = vld [vmem:[%s1349 + $0x230] sm:$0xf]
    %v1444 = vld [vmem:[%s1349 + $0x234] sm:$0xff]
    %v1445 = vld [vmem:[%s1349 + $0x23c] sm:$0xf]
    %v1446 = vld [vmem:[%s1349 + $0x240] sm:$0xff]
    %v1447 = vld [vmem:[%s1349 + $0x248] sm:$0xf]
    %v1448 = vld [vmem:[%s1349 + $0x24c] sm:$0xff]
    %v1449 = vld [vmem:[%s1349 + $0x254] sm:$0xf]
    %v1450 = vld [vmem:[%s1349 + $0x258] sm:$0xff]
    %v1451 = vld [vmem:[%s1349 + $0x260] sm:$0xf]
    %v1452 = vld [vmem:[%s1349 + $0x264] sm:$0xff]
    %v1453 = vld [vmem:[%s1349 + $0x26c] sm:$0xf]
    %v1454 = vld [vmem:[%s1349 + $0x270] sm:$0xff]
    %v1455 = vld [vmem:[%s1349 + $0x278] sm:$0xf]
    %v1456 = vld [vmem:[%s1349 + $0x27c] sm:$0xff]
    %v1457 = vld [vmem:[%s1349 + $0x284] sm:$0xf]
    %v1458 = vld [vmem:[%s1349 + $0x288] sm:$0xff]
    %v1459 = vld [vmem:[%s1349 + $0x290] sm:$0xf]
    %v1460 = vld [vmem:[%s1349 + $0x294] sm:$0xff]
    %v1461 = vld [vmem:[%s1349 + $0x29c] sm:$0xf]
    %v1462 = vld [vmem:[%s1349 + $0x2a0] sm:$0xff]
    %v1463 = vld [vmem:[%s1349 + $0x2a8] sm:$0xf]
    %v1464 = vld [vmem:[%s1349 + $0x2ac] sm:$0xff]
    %v1465 = vld [vmem:[%s1349 + $0x2b4] sm:$0xf]
    %v1466 = vld [vmem:[%s1349 + $0x2b8] sm:$0xff]
    %v1467 = vld [vmem:[%s1349 + $0x2c0] sm:$0xf]
    %v1468 = vld [vmem:[%s1349 + $0x2c4] sm:$0xff]
    %v1469 = vld [vmem:[%s1349 + $0x2cc] sm:$0xf]
    %v1470 = vld [vmem:[%s1349 + $0x2d0] sm:$0xff]
    %v1471 = vld [vmem:[%s1349 + $0x2d8] sm:$0xf]
    %v1472 = vld [vmem:[%s1349 + $0x2dc] sm:$0xff]
    %v1473 = vld [vmem:[%s1349 + $0x2e4] sm:$0xf]
    %v1474 = vld [vmem:[%s1349 + $0x2e8] sm:$0xff]
    %v1475 = vld [vmem:[%s1349 + $0x2f0] sm:$0xf]
    %v1476 = vld [vmem:[%s1349 + $0x2f4] sm:$0xff]
    %v1477 = vld [vmem:[%s1349 + $0x2fc] sm:$0xf]
    %s1478 = scalar_lea.vmem [#allocation7], 1
    %v1479 = vld [vmem:[%s1478] ss:$2 sm:$0x7]
    %v1481 = vperm.slane %v1479, 0
    %v1482 = vperm.slane %v1479, 1
    %v1483 = vperm.slane %v1479, 2
    %v1491 = vunpack.c.l.b16 %v479
    %v1492 = vunpack.c.h.b16 %v479
    %v1493 = vunpack.c.l.b16 %v480
    %v1494 = vunpack.c.h.b16 %v480
    %v1495 = vunpack.c.l.b16 %v483
    %v1496 = vunpack.c.h.b16 %v483
    %v1497 = vunpack.c.l.b16 %v484
    %v1498 = vunpack.c.h.b16 %v484
    %v1499 = vpack.c.b16 %v1495, %v1491
    %v1500 = vpack.c.b16 %v1496, %v1492
    %v1501 = vpack.c.b16 %v1497, %v1493
    %v1502 = vpack.c.b16 %v1498, %v1494
    %v1635 = vunpack.c.l.b16 %v1350
    %v1636 = vunpack.c.h.b16 %v1350
    %v1637 = vunpack.c.l.b16 %v1351
    %v1638 = vunpack.c.l.b16 %v1352
    %v1639 = vunpack.c.h.b16 %v1352
    %v1640 = vunpack.c.l.b16 %v1353
    %v1641 = vunpack.c.l.b16 %v1354
    %v1642 = vunpack.c.h.b16 %v1354
    %v1643 = vunpack.c.l.b16 %v1355
    %v1644 = vunpack.c.l.b16 %v1356
    %v1645 = vunpack.c.h.b16 %v1356
    %v1646 = vunpack.c.l.b16 %v1357
    %v1647 = vunpack.c.l.b16 %v1358
    %v1648 = vunpack.c.h.b16 %v1358
    %v1649 = vunpack.c.l.b16 %v1359
    %v1650 = vunpack.c.l.b16 %v1360
    %v1651 = vunpack.c.h.b16 %v1360
    %v1652 = vunpack.c.l.b16 %v1361
    %v1653 = vunpack.c.l.b16 %v1362
    %v1654 = vunpack.c.h.b16 %v1362
    %v1655 = vunpack.c.l.b16 %v1363
    %v1656 = vunpack.c.l.b16 %v1364
    %v1657 = vunpack.c.h.b16 %v1364
    %v1658 = vunpack.c.l.b16 %v1365
    %v1659 = vunpack.c.l.b16 %v1366
    %v1660 = vunpack.c.h.b16 %v1366
    %v1661 = vunpack.c.l.b16 %v1367
    %v1662 = vunpack.c.l.b16 %v1368
    %v1663 = vunpack.c.h.b16 %v1368
    %v1664 = vunpack.c.l.b16 %v1369
    %v1665 = vunpack.c.l.b16 %v1370
    %v1666 = vunpack.c.h.b16 %v1370
    %v1667 = vunpack.c.l.b16 %v1371
    %v1668 = vunpack.c.l.b16 %v1372
    %v1669 = vunpack.c.h.b16 %v1372
    %v1670 = vunpack.c.l.b16 %v1373
    %v1671 = vunpack.c.l.b16 %v1374
    %v1672 = vunpack.c.h.b16 %v1374
    %v1673 = vunpack.c.l.b16 %v1375
    %v1674 = vunpack.c.l.b16 %v1376
    %v1675 = vunpack.c.h.b16 %v1376
    %v1676 = vunpack.c.l.b16 %v1377
    %v1677 = vunpack.c.l.b16 %v1378
    %v1678 = vunpack.c.h.b16 %v1378
    %v1679 = vunpack.c.l.b16 %v1379
    %v1680 = vunpack.c.l.b16 %v1380
    %v1681 = vunpack.c.h.b16 %v1380
    %v1682 = vunpack.c.l.b16 %v1381
    %v1683 = vunpack.c.l.b16 %v1382
    %v1684 = vunpack.c.h.b16 %v1382
    %v1685 = vunpack.c.l.b16 %v1383
    %v1686 = vunpack.c.l.b16 %v1384
    %v1687 = vunpack.c.h.b16 %v1384
    %v1688 = vunpack.c.l.b16 %v1385
    %v1689 = vunpack.c.l.b16 %v1386
    %v1690 = vunpack.c.h.b16 %v1386
    %v1691 = vunpack.c.l.b16 %v1387
    %v1692 = vunpack.c.l.b16 %v1388
    %v1693 = vunpack.c.h.b16 %v1388
    %v1694 = vunpack.c.l.b16 %v1389
    %v1695 = vunpack.c.l.b16 %v1390
    %v1696 = vunpack.c.h.b16 %v1390
    %v1697 = vunpack.c.l.b16 %v1391
    %v1698 = vunpack.c.l.b16 %v1392
    %v1699 = vunpack.c.h.b16 %v1392
    %v1700 = vunpack.c.l.b16 %v1393
    %v1701 = vunpack.c.l.b16 %v1394
    %v1702 = vunpack.c.h.b16 %v1394
    %v1703 = vunpack.c.l.b16 %v1395
    %v1704 = vunpack.c.l.b16 %v1396
    %v1705 = vunpack.c.h.b16 %v1396
    %v1706 = vunpack.c.l.b16 %v1397
    %v1707 = vunpack.c.l.b16 %v1398
    %v1708 = vunpack.c.h.b16 %v1398
    %v1709 = vunpack.c.l.b16 %v1399
    %v1710 = vunpack.c.l.b16 %v1400
    %v1711 = vunpack.c.h.b16 %v1400
    %v1712 = vunpack.c.l.b16 %v1401
    %v1713 = vunpack.c.l.b16 %v1402
    %v1714 = vunpack.c.h.b16 %v1402
    %v1715 = vunpack.c.l.b16 %v1403
    %v1716 = vunpack.c.l.b16 %v1404
    %v1717 = vunpack.c.h.b16 %v1404
    %v1718 = vunpack.c.l.b16 %v1405
    %v1719 = vunpack.c.l.b16 %v1406
    %v1720 = vunpack.c.h.b16 %v1406
    %v1721 = vunpack.c.l.b16 %v1407
    %v1722 = vunpack.c.l.b16 %v1408
    %v1723 = vunpack.c.h.b16 %v1408
    %v1724 = vunpack.c.l.b16 %v1409
    %v1725 = vunpack.c.l.b16 %v1410
    %v1726 = vunpack.c.h.b16 %v1410
    %v1727 = vunpack.c.l.b16 %v1411
    %v1728 = vunpack.c.l.b16 %v1412
    %v1729 = vunpack.c.h.b16 %v1412
    %v1730 = vunpack.c.l.b16 %v1413
    %v1731 = vunpack.c.l.b16 %v1414
    %v1732 = vunpack.c.h.b16 %v1414
    %v1733 = vunpack.c.l.b16 %v1415
    %v1734 = vunpack.c.l.b16 %v1416
    %v1735 = vunpack.c.h.b16 %v1416
    %v1736 = vunpack.c.l.b16 %v1417
    %v1737 = vunpack.c.l.b16 %v1418
    %v1738 = vunpack.c.h.b16 %v1418
    %v1739 = vunpack.c.l.b16 %v1419
    %v1740 = vunpack.c.l.b16 %v1420
    %v1741 = vunpack.c.h.b16 %v1420
    %v1742 = vunpack.c.l.b16 %v1421
    %v1743 = vunpack.c.l.b16 %v1422
    %v1744 = vunpack.c.h.b16 %v1422
    %v1745 = vunpack.c.l.b16 %v1423
    %v1746 = vunpack.c.l.b16 %v1424
    %v1747 = vunpack.c.h.b16 %v1424
    %v1748 = vunpack.c.l.b16 %v1425
    %v1749 = vunpack.c.l.b16 %v1426
    %v1750 = vunpack.c.h.b16 %v1426
    %v1751 = vunpack.c.l.b16 %v1427
    %v1752 = vunpack.c.l.b16 %v1428
    %v1753 = vunpack.c.h.b16 %v1428
    %v1754 = vunpack.c.l.b16 %v1429
    %v1755 = vunpack.c.l.b16 %v1430
    %v1756 = vunpack.c.h.b16 %v1430
    %v1757 = vunpack.c.l.b16 %v1431
    %v1758 = vunpack.c.l.b16 %v1432
    %v1759 = vunpack.c.h.b16 %v1432
    %v1760 = vunpack.c.l.b16 %v1433
    %v1761 = vunpack.c.l.b16 %v1434
    %v1762 = vunpack.c.h.b16 %v1434
    %v1763 = vunpack.c.l.b16 %v1435
    %v1764 = vunpack.c.l.b16 %v1436
    %v1765 = vunpack.c.h.b16 %v1436
    %v1766 = vunpack.c.l.b16 %v1437
    %v1767 = vunpack.c.l.b16 %v1438
    %v1768 = vunpack.c.h.b16 %v1438
    %v1769 = vunpack.c.l.b16 %v1439
    %v1770 = vunpack.c.l.b16 %v1440
    %v1771 = vunpack.c.h.b16 %v1440
    %v1772 = vunpack.c.l.b16 %v1441
    %v1773 = vunpack.c.l.b16 %v1442
    %v1774 = vunpack.c.h.b16 %v1442
    %v1775 = vunpack.c.l.b16 %v1443
    %v1776 = vunpack.c.l.b16 %v1444
    %v1777 = vunpack.c.h.b16 %v1444
    %v1778 = vunpack.c.l.b16 %v1445
    %v1779 = vunpack.c.l.b16 %v1446
    %v1780 = vunpack.c.h.b16 %v1446
    %v1781 = vunpack.c.l.b16 %v1447
    %v1782 = vunpack.c.l.b16 %v1448
    %v1783 = vunpack.c.h.b16 %v1448
    %v1784 = vunpack.c.l.b16 %v1449
    %v1785 = vunpack.c.l.b16 %v1450
    %v1786 = vunpack.c.h.b16 %v1450
    %v1787 = vunpack.c.l.b16 %v1451
    %v1788 = vunpack.c.l.b16 %v1452
    %v1789 = vunpack.c.h.b16 %v1452
    %v1790 = vunpack.c.l.b16 %v1453
    %v1791 = vunpack.c.l.b16 %v1454
    %v1792 = vunpack.c.h.b16 %v1454
    %v1793 = vunpack.c.l.b16 %v1455
    %v1794 = vunpack.c.l.b16 %v1456
    %v1795 = vunpack.c.h.b16 %v1456
    %v1796 = vunpack.c.l.b16 %v1457
    %v1797 = vunpack.c.l.b16 %v1458
    %v1798 = vunpack.c.h.b16 %v1458
    %v1799 = vunpack.c.l.b16 %v1459
    %v1800 = vunpack.c.l.b16 %v1460
    %v1801 = vunpack.c.h.b16 %v1460
    %v1802 = vunpack.c.l.b16 %v1461
    %v1803 = vunpack.c.l.b16 %v1462
    %v1804 = vunpack.c.h.b16 %v1462
    %v1805 = vunpack.c.l.b16 %v1463
    %v1806 = vunpack.c.l.b16 %v1464
    %v1807 = vunpack.c.h.b16 %v1464
    %v1808 = vunpack.c.l.b16 %v1465
    %v1809 = vunpack.c.l.b16 %v1466
    %v1810 = vunpack.c.h.b16 %v1466
    %v1811 = vunpack.c.l.b16 %v1467
    %v1812 = vunpack.c.l.b16 %v1468
    %v1813 = vunpack.c.h.b16 %v1468
    %v1814 = vunpack.c.l.b16 %v1469
    %v1815 = vunpack.c.l.b16 %v1470
    %v1816 = vunpack.c.h.b16 %v1470
    %v1817 = vunpack.c.l.b16 %v1471
    %v1818 = vunpack.c.l.b16 %v1472
    %v1819 = vunpack.c.h.b16 %v1472
    %v1820 = vunpack.c.l.b16 %v1473
    %v1821 = vunpack.c.l.b16 %v1474
    %v1822 = vunpack.c.h.b16 %v1474
    %v1823 = vunpack.c.l.b16 %v1475
    %v1824 = vunpack.c.l.b16 %v1476
    %v1825 = vunpack.c.h.b16 %v1476
    %v1826 = vunpack.c.l.b16 %v1477
    %v1827 = vpack.c.b16 %v1638, %v1635
    %v1828 = vpack.c.b16 %v1639, %v1636
    %v1829 = vpack.c.b16 %v1640, %v1637
    %v1830 = vpack.c.b16 %v1644, %v1641
    %v1831 = vpack.c.b16 %v1645, %v1642
    %v1832 = vpack.c.b16 %v1646, %v1643
    %v1833 = vpack.c.b16 %v1650, %v1647
    %v1834 = vpack.c.b16 %v1651, %v1648
    %v1835 = vpack.c.b16 %v1652, %v1649
    %v1836 = vpack.c.b16 %v1656, %v1653
    %v1837 = vpack.c.b16 %v1657, %v1654
    %v1838 = vpack.c.b16 %v1658, %v1655
    %v1839 = vpack.c.b16 %v1662, %v1659
    %v1840 = vpack.c.b16 %v1663, %v1660
    %v1841 = vpack.c.b16 %v1664, %v1661
    %v1842 = vpack.c.b16 %v1668, %v1665
    %v1843 = vpack.c.b16 %v1669, %v1666
    %v1844 = vpack.c.b16 %v1670, %v1667
    %v1845 = vpack.c.b16 %v1674, %v1671
    %v1846 = vpack.c.b16 %v1675, %v1672
    %v1847 = vpack.c.b16 %v1676, %v1673
    %v1848 = vpack.c.b16 %v1680, %v1677
    %v1849 = vpack.c.b16 %v1681, %v1678
    %v1850 = vpack.c.b16 %v1682, %v1679
    %v1851 = vpack.c.b16 %v1686, %v1683
    %v1852 = vpack.c.b16 %v1687, %v1684
    %v1853 = vpack.c.b16 %v1688, %v1685
    %v1854 = vpack.c.b16 %v1692, %v1689
    %v1855 = vpack.c.b16 %v1693, %v1690
    %v1856 = vpack.c.b16 %v1694, %v1691
    %v1857 = vpack.c.b16 %v1698, %v1695
    %v1858 = vpack.c.b16 %v1699, %v1696
    %v1859 = vpack.c.b16 %v1700, %v1697
    %v1860 = vpack.c.b16 %v1704, %v1701
    %v1861 = vpack.c.b16 %v1705, %v1702
    %v1862 = vpack.c.b16 %v1706, %v1703
    %v1863 = vpack.c.b16 %v1710, %v1707
    %v1864 = vpack.c.b16 %v1711, %v1708
    %v1865 = vpack.c.b16 %v1712, %v1709
    %v1866 = vpack.c.b16 %v1716, %v1713
    %v1867 = vpack.c.b16 %v1717, %v1714
    %v1868 = vpack.c.b16 %v1718, %v1715
    %v1869 = vpack.c.b16 %v1722, %v1719
    %v1870 = vpack.c.b16 %v1723, %v1720
    %v1871 = vpack.c.b16 %v1724, %v1721
    %v1872 = vpack.c.b16 %v1728, %v1725
    %v1873 = vpack.c.b16 %v1729, %v1726
    %v1874 = vpack.c.b16 %v1730, %v1727
    %v1875 = vpack.c.b16 %v1734, %v1731
    %v1876 = vpack.c.b16 %v1735, %v1732
    %v1877 = vpack.c.b16 %v1736, %v1733
    %v1878 = vpack.c.b16 %v1740, %v1737
    %v1879 = vpack.c.b16 %v1741, %v1738
    %v1880 = vpack.c.b16 %v1742, %v1739
    %v1881 = vpack.c.b16 %v1746, %v1743
    %v1882 = vpack.c.b16 %v1747, %v1744
    %v1883 = vpack.c.b16 %v1748, %v1745
    %v1884 = vpack.c.b16 %v1752, %v1749
    %v1885 = vpack.c.b16 %v1753, %v1750
    %v1886 = vpack.c.b16 %v1754, %v1751
    %v1887 = vpack.c.b16 %v1758, %v1755
    %v1888 = vpack.c.b16 %v1759, %v1756
    %v1889 = vpack.c.b16 %v1760, %v1757
    %v1890 = vpack.c.b16 %v1764, %v1761
    %v1891 = vpack.c.b16 %v1765, %v1762
    %v1892 = vpack.c.b16 %v1766, %v1763
    %v1893 = vpack.c.b16 %v1770, %v1767
    %v1894 = vpack.c.b16 %v1771, %v1768
    %v1895 = vpack.c.b16 %v1772, %v1769
    %v1896 = vpack.c.b16 %v1776, %v1773
    %v1897 = vpack.c.b16 %v1777, %v1774
    %v1898 = vpack.c.b16 %v1778, %v1775
    %v1899 = vpack.c.b16 %v1782, %v1779
    %v1900 = vpack.c.b16 %v1783, %v1780
    %v1901 = vpack.c.b16 %v1784, %v1781
    %v1902 = vpack.c.b16 %v1788, %v1785
    %v1903 = vpack.c.b16 %v1789, %v1786
    %v1904 = vpack.c.b16 %v1790, %v1787
    %v1905 = vpack.c.b16 %v1794, %v1791
    %v1906 = vpack.c.b16 %v1795, %v1792
    %v1907 = vpack.c.b16 %v1796, %v1793
    %v1908 = vpack.c.b16 %v1800, %v1797
    %v1909 = vpack.c.b16 %v1801, %v1798
    %v1910 = vpack.c.b16 %v1802, %v1799
    %v1911 = vpack.c.b16 %v1806, %v1803
    %v1912 = vpack.c.b16 %v1807, %v1804
    %v1913 = vpack.c.b16 %v1808, %v1805
    %v1914 = vpack.c.b16 %v1812, %v1809
    %v1915 = vpack.c.b16 %v1813, %v1810
    %v1916 = vpack.c.b16 %v1814, %v1811
    %v1917 = vpack.c.b16 %v1818, %v1815
    %v1918 = vpack.c.b16 %v1819, %v1816
    %v1919 = vpack.c.b16 %v1820, %v1817
    %v1920 = vpack.c.b16 %v1824, %v1821
    %v1921 = vpack.c.b16 %v1825, %v1822
    %v1922 = vpack.c.b16 %v1826, %v1823
    %2019 = vmatpush.bf16.msra.mxu0 %v1848
    %2020 = vmatpush.bf16.msra.mxu0 %v1845
    %2021 = vmatpush.bf16.msra.mxu0 %v1842
    %2022 = vmatpush.bf16.msra.mxu0 %v1839
    %2023 = vmatpush.bf16.msra.mxu0 %v1836
    %2024 = vmatpush.bf16.msra.mxu0 %v1833
    %2025 = vmatpush.bf16.msra.mxu0 %v1830
    %2026 = vmatpush.bf16.msra.mxu0 %v1827
    %2027 = vmatmul.bf16.gmra.mxu0 %v1499
    %v2028 = vpop.f32.mrf.mxu0
    %v2029 = vadd.f32 %v1481, %v2028
    %v2030 = vpop.f32.mrf.mxu0
    %v2031 = vadd.f32 %v1481, %v2030
    %2032 = vdwg.mxu0
    %2033 = vmatpush.bf16.msra.mxu0 %v1872
    %2034 = vmatpush.bf16.msra.mxu0 %v1869
    %2035 = vmatpush.bf16.msra.mxu0 %v1866
    %2036 = vmatpush.bf16.msra.mxu0 %v1863
    %2037 = vmatpush.bf16.msra.mxu0 %v1860
    %2038 = vmatpush.bf16.msra.mxu0 %v1857
    %2039 = vmatpush.bf16.msra.mxu0 %v1854
    %2040 = vmatpush.bf16.msra.mxu0 %v1851
    %2041 = vmatmul.bf16.gmra.mxu0 %v1500
    %v2042 = vpop.f32.mrf.mxu0
    %v2043 = vadd.f32 %v2029, %v2042
    %v2044 = vpop.f32.mrf.mxu0
    %v2045 = vadd.f32 %v2031, %v2044
    %2046 = vdwg.mxu0
    %2047 = vmatpush.bf16.msra.mxu0 %v1896
    %2048 = vmatpush.bf16.msra.mxu0 %v1893
    %2049 = vmatpush.bf16.msra.mxu0 %v1890
    %2050 = vmatpush.bf16.msra.mxu0 %v1887
    %2051 = vmatpush.bf16.msra.mxu0 %v1884
    %2052 = vmatpush.bf16.msra.mxu0 %v1881
    %2053 = vmatpush.bf16.msra.mxu0 %v1878
    %2054 = vmatpush.bf16.msra.mxu0 %v1875
    %2055 = vmatmul.bf16.gmra.mxu0 %v1501
    %v2056 = vpop.f32.mrf.mxu0
    %v2057 = vadd.f32 %v2043, %v2056
    %v2058 = vpop.f32.mrf.mxu0
    %v2059 = vadd.f32 %v2045, %v2058
    %2060 = vdwg.mxu0
    %2061 = vmatpush.bf16.msra.mxu0 %v1920
    %2062 = vmatpush.bf16.msra.mxu0 %v1917
    %2063 = vmatpush.bf16.msra.mxu0 %v1914
    %2064 = vmatpush.bf16.msra.mxu0 %v1911
    %2065 = vmatpush.bf16.msra.mxu0 %v1908
    %2066 = vmatpush.bf16.msra.mxu0 %v1905
    %2067 = vmatpush.bf16.msra.mxu0 %v1902
    %2068 = vmatpush.bf16.msra.mxu0 %v1899
    %2069 = vmatmul.bf16.gmra.mxu0 %v1502
    %v2070 = vpop.f32.mrf.mxu0
    %v2071 = vadd.f32 %v2057, %v2070
    %v2072 = vpop.f32.mrf.mxu0
    %v2073 = vadd.f32 %v2059, %v2072
    %2074 = vdwg.mxu0
    %2075 = vmatpush.bf16.msra.mxu0 %v1849
    %2076 = vmatpush.bf16.msra.mxu0 %v1846
    %2077 = vmatpush.bf16.msra.mxu0 %v1843
    %2078 = vmatpush.bf16.msra.mxu0 %v1840
    %2079 = vmatpush.bf16.msra.mxu0 %v1837
    %2080 = vmatpush.bf16.msra.mxu0 %v1834
    %2081 = vmatpush.bf16.msra.mxu0 %v1831
    %2082 = vmatpush.bf16.msra.mxu0 %v1828
    %2083 = vmatmul.bf16.gmra.mxu0 %v1499
    %v2084 = vpop.f32.mrf.mxu0
    %v2085 = vadd.f32 %v1482, %v2084
    %v2086 = vpop.f32.mrf.mxu0
    %v2087 = vadd.f32 %v1482, %v2086
    %2088 = vdwg.mxu0
    %2089 = vmatpush.bf16.msra.mxu0 %v1873
    %2090 = vmatpush.bf16.msra.mxu0 %v1870
    %2091 = vmatpush.bf16.msra.mxu0 %v1867
    %2092 = vmatpush.bf16.msra.mxu0 %v1864
    %2093 = vmatpush.bf16.msra.mxu0 %v1861
    %2094 = vmatpush.bf16.msra.mxu0 %v1858
    %2095 = vmatpush.bf16.msra.mxu0 %v1855
    %2096 = vmatpush.bf16.msra.mxu0 %v1852
    %2097 = vmatmul.bf16.gmra.mxu0 %v1500
    %v2098 = vpop.f32.mrf.mxu0
    %v2099 = vadd.f32 %v2085, %v2098
    %v2100 = vpop.f32.mrf.mxu0
    %v2101 = vadd.f32 %v2087, %v2100
    %2102 = vdwg.mxu0
    %2103 = vmatpush.bf16.msra.mxu0 %v1897
    %2104 = vmatpush.bf16.msra.mxu0 %v1894
    %2105 = vmatpush.bf16.msra.mxu0 %v1891
    %2106 = vmatpush.bf16.msra.mxu0 %v1888
    %2107 = vmatpush.bf16.msra.mxu0 %v1885
    %2108 = vmatpush.bf16.msra.mxu0 %v1882
    %2109 = vmatpush.bf16.msra.mxu0 %v1879
    %2110 = vmatpush.bf16.msra.mxu0 %v1876
    %2111 = vmatmul.bf16.gmra.mxu0 %v1501
    %v2112 = vpop.f32.mrf.mxu0
    %v2113 = vadd.f32 %v2099, %v2112
    %v2114 = vpop.f32.mrf.mxu0
    %v2115 = vadd.f32 %v2101, %v2114
    %2116 = vdwg.mxu0
    %2117 = vmatpush.bf16.msra.mxu0 %v1921
    %2118 = vmatpush.bf16.msra.mxu0 %v1918
    %2119 = vmatpush.bf16.msra.mxu0 %v1915
    %2120 = vmatpush.bf16.msra.mxu0 %v1912
    %2121 = vmatpush.bf16.msra.mxu0 %v1909
    %2122 = vmatpush.bf16.msra.mxu0 %v1906
    %2123 = vmatpush.bf16.msra.mxu0 %v1903
    %2124 = vmatpush.bf16.msra.mxu0 %v1900
    %2125 = vmatmul.bf16.gmra.mxu0 %v1502
    %v2126 = vpop.f32.mrf.mxu0
    %v2127 = vadd.f32 %v2113, %v2126
    %v2128 = vpop.f32.mrf.mxu0
    %v2129 = vadd.f32 %v2115, %v2128
    %2130 = vdwg.mxu0
    %2131 = vmatpush.bf16.msra.mxu0 %v1850
    %2132 = vmatpush.bf16.msra.mxu0 %v1847
    %2133 = vmatpush.bf16.msra.mxu0 %v1844
    %2134 = vmatpush.bf16.msra.mxu0 %v1841
    %2135 = vmatpush.bf16.msra.mxu0 %v1838
    %2136 = vmatpush.bf16.msra.mxu0 %v1835
    %2137 = vmatpush.bf16.msra.mxu0 %v1832
    %2138 = vmatpush.bf16.msra.mxu0 %v1829
    %2139 = vmatmul.bf16.gmra.mxu0 %v1499
    %v2140 = vpop.f32.mrf.mxu0
    %v2141 = vadd.f32 %v1483, %v2140
    %v2142 = vpop.f32.mrf.mxu0
    %v2143 = vadd.f32 %v1483, %v2142
    %2144 = vdwg.mxu0
    %2145 = vmatpush.bf16.msra.mxu0 %v1874
    %2146 = vmatpush.bf16.msra.mxu0 %v1871
    %2147 = vmatpush.bf16.msra.mxu0 %v1868
    %2148 = vmatpush.bf16.msra.mxu0 %v1865
    %2149 = vmatpush.bf16.msra.mxu0 %v1862
    %2150 = vmatpush.bf16.msra.mxu0 %v1859
    %2151 = vmatpush.bf16.msra.mxu0 %v1856
    %2152 = vmatpush.bf16.msra.mxu0 %v1853
    %2153 = vmatmul.bf16.gmra.mxu0 %v1500
    %v2154 = vpop.f32.mrf.mxu0
    %v2155 = vadd.f32 %v2141, %v2154
    %v2156 = vpop.f32.mrf.mxu0
    %v2157 = vadd.f32 %v2143, %v2156
    %2158 = vdwg.mxu0
    %2159 = vmatpush.bf16.msra.mxu0 %v1898
    %2160 = vmatpush.bf16.msra.mxu0 %v1895
    %2161 = vmatpush.bf16.msra.mxu0 %v1892
    %2162 = vmatpush.bf16.msra.mxu0 %v1889
    %2163 = vmatpush.bf16.msra.mxu0 %v1886
    %2164 = vmatpush.bf16.msra.mxu0 %v1883
    %2165 = vmatpush.bf16.msra.mxu0 %v1880
    %2166 = vmatpush.bf16.msra.mxu0 %v1877
    %2167 = vmatmul.bf16.gmra.mxu0 %v1501
    %v2168 = vpop.f32.mrf.mxu0
    %v2169 = vadd.f32 %v2155, %v2168
    %v2170 = vpop.f32.mrf.mxu0
    %v2171 = vadd.f32 %v2157, %v2170
    %2172 = vdwg.mxu0
    %2173 = vmatpush.bf16.msra.mxu0 %v1922
    %2174 = vmatpush.bf16.msra.mxu0 %v1919
    %2175 = vmatpush.bf16.msra.mxu0 %v1916
    %2176 = vmatpush.bf16.msra.mxu0 %v1913
    %2177 = vmatpush.bf16.msra.mxu0 %v1910
    %2178 = vmatpush.bf16.msra.mxu0 %v1907
    %2179 = vmatpush.bf16.msra.mxu0 %v1904
    %2180 = vmatpush.bf16.msra.mxu0 %v1901
    %2181 = vmatmul.bf16.gmra.mxu0 %v1502
    %v2182 = vpop.f32.mrf.mxu0
    %v2183 = vadd.f32 %v2169, %v2182
    %v2184 = vpop.f32.mrf.mxu0
    %v2185 = vadd.f32 %v2171, %v2184
    %2186 = vdwg.mxu0
    %v2187 = vmax.f32 %v2071, 0.0
    %v2188 = vmax.f32 %v2127, 0.0
    %v2189 = vmax.f32 %v2183, 0.0
    %v2190 = vmax.f32 %v2073, 0.0
    %v2191 = vmax.f32 %v2129, 0.0
    %v2192 = vmax.f32 %v2185, 0.0
    %s2193 = scalar_lea.vmem %s7, 1
    %v2194 = vld [vmem:[%s2193] ss:$2 sm:$0x7]
    %v2196 = vperm.slane %v2194, 0
    %v2197 = vperm.slane %v2194, 1
    %v2198 = vperm.slane %v2194, 2
    %v2202 = vmul.f32 %v2187, %v2196
    %v2203 = vmul.f32 %v2188, %v2197
    %v2204 = vmul.f32 %v2189, %v2198
    %v2205 = vmul.f32 %v2190, %v2196
    %v2206 = vmul.f32 %v2191, %v2197
    %v2207 = vmul.f32 %v2192, %v2198
    %v2208 = vadd.f32 %v2202, %v2203
    %v2209 = vadd.f32 %v2208, %v2204
    %2210 = vadd.xlane.f32.xlu0 %v2209
    %v2211 = vpop.xlane.xlu0 %2210
    %v2212 = vadd.f32 %v2205, %v2206
    %v2213 = vadd.f32 %v2212, %v2207
    %2214 = vadd.xlane.f32.xlu0 %v2213
    %v2215 = vpop.xlane.xlu0 %2214
    %vm2216 = vcmask 7168
    %v2217 = vsel %vm2216, %v1344, %v2211
    %v2218 = vsel %vm2216, %v1348, %v2215
    %v2219 = vld [vmem:[%s8] sm:$0x1]
    %v2221 = vperm.slane %v2219, 0
    %v2223 = vadd.f32 %v2217, %v2221
    %v2224 = vadd.f32 %v2218, %v2221
    %vm2225 = vcmask 15360
    %2226 = vst.msk [vmem:[%s9] sm:$0xff] %vm2225, %v2223
    %2227 = vst.msk [vmem:[%s9 + $0x8] sm:$0xff] %vm2225, %v2224
    // Predicated region
    $region54: #{tpu_custom_call.1} parent=1 // pred_check
      _
    $region55: #{tpu_custom_call.1} parent=1 // pred_check_branch
      %2229 = sbr.rel (0) target = $region57
    $region56: #{tpu_custom_call.1} parent=1 // pred_region
      _
    $region57: #{tpu_custom_call.1} parent=1 // pred_fallthru
      _
    // Predicated region
    $region58: #{tpu_custom_call.1} parent=1 // pred_check
      _
    $region59: #{tpu_custom_call.1} parent=1 // pred_check_branch
      %2231 = sbr.rel (0) target = $region61
    $region60: #{tpu_custom_call.1} parent=1 // pred_region
      _
    $region61: #{tpu_custom_call.1} parent=1 // pred_fallthru
      _
    %2232 = vsyncpa [#allocation3], 1
    %2233 = vsyncpa [#allocation5], 1
    %2234 = vsyncpa [#allocation8], 1

</llo_original>
